<compile_context>
chip_gen: v7x
topology: tpu7x:2x2x1
jax: 0.10.0
libtpu: 0.0.40
codegen_flags: <defaults>
</compile_context>

<pallas_src>
import jax
import jax.numpy as jnp
import numpy as np
from jax.experimental import pallas as pl
from jax.experimental.pallas import tpu as pltpu

NEG_SLOPE = 0.01      # nn.LeakyReLU / F.leaky_relu default
LANES = 128           # lane width of the packed weight / output slabs


def _lrelu(x):
    return jnp.where(x >= 0, x, NEG_SLOPE * x)


def _align8(n):
    return ((n + 7) // 8) * 8


# ----------------------------------------------------------------------------
# Slab layout: every weight (pre-transposed to (in, out)) and bias ((1, out))
# gets an 8-row-aligned band of rows inside a single (total_rows, 128) f32
# slab, with its `out` values in lanes [0, out) and zeros elsewhere.
# ----------------------------------------------------------------------------
def _slab_layout(L, G, H, num_layers, pooling):
    entries = [
        ('phi_loc.w', L, H), ('phi_loc.b', 1, H),
        ('phi_glob1.w', G, H), ('phi_glob1.b', 1, H),
        ('phi_glob2.w', H, G), ('phi_glob2.b', 1, G),
    ]
    for i in range(num_layers):
        entries += [(f'L{i}.phi1.wg', G, H), (f'L{i}.phi1.ws', H, H)]
        if pooling == 'sum_mean':
            entries += [(f'L{i}.phi1.wm', H, H)]
        entries += [
            (f'L{i}.phi1.b', 1, H),
            (f'L{i}.phi2.w', H, G), (f'L{i}.phi2.b', 1, G),
            (f'L{i}.rho1.wh', H, H), (f'L{i}.rho1.wg', G, H), (f'L{i}.rho1.b', 1, H),
            (f'L{i}.rho2.w', H, H), (f'L{i}.rho2.b', 1, H),
        ]
    # rho_loc is kept at full 128 lanes (zero-padded) so the final z_loc output
    # is computed lane-dense and stored unmasked.
    entries += [('rho_loc.w', H, LANES), ('rho_loc.b', 1, LANES)]
    layout, row = {}, 0
    for name, rows, cols in entries:
        layout[name] = (row, rows, cols)
        row += _align8(rows)
    return layout, row


# ----------------------------------------------------------------------------
# Fused kernel factory: the entire Epic.forward in one kernel.
#   inputs : zg (B, G), zl_flat (B*N, L), slab (R, 128)
#   output : out (B*N + B, 128)  -- rows [0, B*N) = z_loc_out (lanes [0, L)),
#                                   rows [B*N, B*N+B) = z_glob_out (lanes [0, G)).
# ----------------------------------------------------------------------------
def _make_fused_epic_kernel(B, N, L, G, H, num_layers, pooling, layout,
                            compute_dtype):
    BN = B * N
    inv_n = 1.0 / float(N)

    def kernel(zg_ref, zl_ref, slab_ref, out_ref):
        def w(name):
            r0, rows, cols = layout[name]
            return slab_ref[r0:r0 + rows, :cols]      # static slice -> one VMEM load

        def dot(a, b):                                 # MXU, f32 accumulation
            return jnp.dot(a.astype(compute_dtype), b.astype(compute_dtype),
                           preferred_element_type=jnp.float32)

        # ---- stem: phi_loc, phi_glob (Linear + LeakyReLU x2) ----
        zl = _lrelu(dot(zl_ref[...], w('phi_loc.w')) + w('phi_loc.b'))      # (BN, H)
        zg = _lrelu(dot(zg_ref[...], w('phi_glob1.w')) + w('phi_glob1.b'))  # (B, H)
        zg = _lrelu(dot(zg, w('phi_glob2.w')) + w('phi_glob2.b'))           # (B, G)
        zg_in, zl_in = zg, zl                          # outer residual inputs

        # ---- Epic layers (unrolled; every weight is VMEM-resident) ----
        for i in range(num_layers):
            pre = f'L{i}.'
            # sum-pool over the N local slots: free reshape (N is a multiple of
            # 8 here) + cross-sublane reduce; no dense selection matrix.
            z_sum = jnp.sum(zl.reshape(B, N, H), axis=1)                    # (B, H)
            # concat-linear in split-K form (weights pre-split offline).
            acc = dot(zg, w(pre + 'phi1.wg')) + dot(z_sum, w(pre + 'phi1.ws'))
            if pooling == 'sum_mean':
                acc = acc + dot(z_sum * inv_n, w(pre + 'phi1.wm'))
            t = _lrelu(acc + w(pre + 'phi1.b'))                             # (B, H)
            zg_new = _lrelu(dot(t, w(pre + 'phi2.w')) + w(pre + 'phi2.b') + zg)

            # broadcast z_glob onto the N slots: project on B rows, then repeat.
            g2l = dot(zg_new, w(pre + 'rho1.wg'))                           # (B, H)
            g2l = jnp.broadcast_to(g2l[:, None, :], (B, N, H)).reshape(BN, H)
            u = _lrelu(dot(zl, w(pre + 'rho1.wh')) + g2l + w(pre + 'rho1.b'))
            zl_new = _lrelu(dot(u, w(pre + 'rho2.w')) + w(pre + 'rho2.b') + zl)

            zg = zg_new + zg_in                        # outer residual
            zl = zl_new + zl_in

        # ---- tail: rho_loc at full 128 lanes -> unmasked full-lane store ----
        zl_out = _lrelu(dot(zl, w('rho_loc.w')) + w('rho_loc.b'))           # (BN, 128)
        out_ref[0:BN, :] = zl_out
        out_ref[BN:BN + B, :G] = zg                    # tiny (B, G) masked store

    return kernel


# ----------------------------------------------------------------------------
# Parameter construction (deterministic, mimics weight_norm(nn.Linear))
# ----------------------------------------------------------------------------
def make_wn_linear(key, out_dim, in_dim):
    kv, kg, kb = jax.random.split(key, 3)
    v = jax.random.normal(kv, (out_dim, in_dim), jnp.float32) * 0.3
    g = jax.random.uniform(kg, (out_dim,), jnp.float32, minval=0.5, maxval=1.5)
    b = jax.random.normal(kb, (out_dim,), jnp.float32) * 0.1
    w = g[:, None] * v / jnp.linalg.norm(v, axis=1, keepdims=True)
    return w, b


def make_epic_params(key, dim_loc, dim_glob, dim_hidden, num_layers, pooling='sum'):
    keys = jax.random.split(key, 4 + 4 * num_layers)
    pool_in = dim_glob + dim_hidden if pooling == 'sum' else dim_glob + 2 * dim_hidden
    p = {
        'phi_loc':   make_wn_linear(keys[0], dim_hidden, dim_loc),
        'phi_glob1': make_wn_linear(keys[1], dim_hidden, dim_glob),
        'phi_glob2': make_wn_linear(keys[2], dim_glob, dim_hidden),
        'rho_loc':   make_wn_linear(keys[3], dim_loc, dim_hidden),
        'layers': [],
    }
    for i in range(num_layers):
        k = keys[4 + 4 * i: 8 + 4 * i]
        p['layers'].append({
            'phi1': make_wn_linear(k[0], dim_hidden, pool_in),
            'phi2': make_wn_linear(k[1], dim_glob, dim_hidden),
            'rho1': make_wn_linear(k[2], dim_hidden, dim_hidden + dim_glob),
            'rho2': make_wn_linear(k[3], dim_hidden, dim_hidden),
        })
    return p


def prepare_epic_params(params, pooling='sum'):
    """One-time prep: transpose weights to (in, out), split the concat-linears,
    and pack every weight/bias into one lane-dense (rows, 128) f32 slab
    (ONE input DMA at kernel launch).  Done once, outside the hot path."""
    H, L = params['phi_loc'][0].shape           # weight is (out=H, in=L)
    G = params['phi_glob2'][0].shape[0]
    num_layers = len(params['layers'])
    layout, total_rows = _slab_layout(L, G, H, num_layers, pooling)
    slab = np.zeros((total_rows, LANES), np.float32)

    def put(name, mat):
        r0, rows, _ = layout[name]
        mat = np.asarray(mat, np.float32)
        if mat.ndim == 1:
            mat = mat.reshape(1, -1)
        assert mat.shape[0] == rows and mat.shape[1] <= LANES, (name, mat.shape)
        slab[r0:r0 + mat.shape[0], :mat.shape[1]] = mat

    wT = lambda wgt: np.asarray(wgt, np.float32).T
    put('phi_loc.w', wT(params['phi_loc'][0]));     put('phi_loc.b', params['phi_loc'][1])
    put('phi_glob1.w', wT(params['phi_glob1'][0])); put('phi_glob1.b', params['phi_glob1'][1])
    put('phi_glob2.w', wT(params['phi_glob2'][0])); put('phi_glob2.b', params['phi_glob2'][1])
    for i, lp in enumerate(params['layers']):
        w1, b1 = lp['phi1']                          # (H, G+H) or (H, G+2H)
        put(f'L{i}.phi1.wg', wT(w1[:, :G]))
        put(f'L{i}.phi1.ws', wT(w1[:, G:G + H]))
        if pooling == 'sum_mean':
            put(f'L{i}.phi1.wm', wT(w1[:, G + H:]))
        put(f'L{i}.phi1.b', b1)
        w2, b2 = lp['phi2'];  put(f'L{i}.phi2.w', wT(w2)); put(f'L{i}.phi2.b', b2)
        wr1, br1 = lp['rho1']                        # (H, H+G)
        put(f'L{i}.rho1.wh', wT(wr1[:, :H]))
        put(f'L{i}.rho1.wg', wT(wr1[:, H:]))
        put(f'L{i}.rho1.b', br1)
        wr2, br2 = lp['rho2']; put(f'L{i}.rho2.w', wT(wr2)); put(f'L{i}.rho2.b', br2)
    wl, bl = params['rho_loc']
    put('rho_loc.w', wT(wl))                         # (H, L) -> lanes [0, L), rest zero
    put('rho_loc.b', bl)
    return jnp.asarray(slab)


# ----------------------------------------------------------------------------
# Fused Epic forward: one pallas_call for the whole network.
# ----------------------------------------------------------------------------
def _epic_forward(slab, z_glob, z_loc, *, dim_hidden, num_layers, pooling='sum',
                  compute_dtype=jnp.float32):
    B, N, L = z_loc.shape
    G = z_glob.shape[1]
    H = dim_hidden
    BN = B * N
    layout, total_rows = _slab_layout(L, G, H, num_layers, pooling)
    assert slab.shape == (total_rows, LANES), (slab.shape, (total_rows, LANES))

    kernel = _make_fused_epic_kernel(B, N, L, G, H, num_layers, pooling, layout,
                                     compute_dtype)
    out = pl.pallas_call(
        kernel,
        out_shape=jax.ShapeDtypeStruct((BN + B, LANES), jnp.float32),
        in_specs=[pl.BlockSpec(memory_space=pltpu.MemorySpace.VMEM)] * 3,
        out_specs=pl.BlockSpec(memory_space=pltpu.MemorySpace.VMEM),
        compiler_params=pltpu.CompilerParams(
            # one weight slab + tiny activations: far under every generation's
            # budget; explicit limit documents the v7x (64 MiB physical) sizing.
            vmem_limit_bytes=32 * 1024 * 1024),
    )(z_glob, z_loc.reshape(BN, L), slab)

    zl_out = out[:BN, :L].reshape(B, N, L)
    zg_out = out[BN:, :G]
    return zg_out, zl_out


epic_forward = jax.jit(
    _epic_forward,
    static_argnames=('dim_hidden', 'num_layers', 'pooling', 'compute_dtype'))


# ----------------------------------------------------------------------------
# Pure-JAX reference (mirrors the PyTorch module; HIGHEST-precision matmuls)
# ----------------------------------------------------------------------------
def epic_forward_ref(params, z_glob, z_loc, pooling='sum'):
    hi = jax.lax.Precision.HIGHEST

    def lin(x, wb):
        w, b = wb
        return jnp.dot(x, w.T, precision=hi) + b

    B, N, _ = z_loc.shape
    zl = _lrelu(lin(z_loc, params['phi_loc']))                    # (B, N, H)
    zg = _lrelu(lin(z_glob, params['phi_glob1']))
    zg = _lrelu(lin(zg, params['phi_glob2']))                     # (B, G)
    zg_in, zl_in = zg, zl
    for lp in params['layers']:
        z_sum = zl.sum(axis=1)
        if pooling == 'sum':
            pool = jnp.concatenate([zg, z_sum], axis=1)
        else:
            pool = jnp.concatenate([zg, z_sum, zl.mean(axis=1)], axis=1)
        t = _lrelu(lin(pool, lp['phi1']))
        zg_new = _lrelu(lin(t, lp['phi2']) + zg)
        g2l = jnp.broadcast_to(zg_new[:, None, :], (B, N, zg.shape[1]))
        cat = jnp.concatenate([zl, g2l], axis=2)
        u = _lrelu(lin(cat, lp['rho1']))
        zl_new = _lrelu(lin(u, lp['rho2']) + zl)
        zg, zl = zg_new + zg_in, zl_new + zl_in
    zl = _lrelu(lin(zl, params['rho_loc']))
    return zg, zl


if __name__ == "__main__":
    # small shapes consistent with the module
    B, N = 2, 8
    dim_loc, dim_glob, dim_hidden, num_layers = 12, 16, 32, 2

    key = jax.random.PRNGKey(0)
    kp_sum, kp_sm, kg, kl = jax.random.split(key, 4)
    z_glob = jax.random.normal(kg, (B, dim_glob), jnp.float32)
    z_loc = jax.random.normal(kl, (B, N, dim_loc), jnp.float32)

    def max_rel_err(a, b):
        a, b = np.asarray(a), np.asarray(b)
        return float(np.max(np.abs(a - b)) / (np.max(np.abs(b)) + 1e-6))

    for pooling, pkey in (('sum', kp_sum), ('sum_mean', kp_sm)):
        params = make_epic_params(pkey, dim_loc, dim_glob, dim_hidden,
                                  num_layers, pooling)
        slab = prepare_epic_params(params, pooling)   # one-time weight packing

        zg_ref, zl_ref = epic_forward_ref(params, z_glob, z_loc, pooling)

        # exact-f32 path (default)
        zg_out, zl_out = epic_forward(slab, z_glob, z_loc, dim_hidden=dim_hidden,
                                      num_layers=num_layers, pooling=pooling)
        jax.block_until_ready((zg_out, zl_out))
        np.testing.assert_allclose(np.asarray(zg_out), np.asarray(zg_ref),
                                   rtol=1e-4, atol=1e-4)
        np.testing.assert_allclose(np.asarray(zl_out), np.asarray(zl_ref),
                                   rtol=1e-4, atol=1e-4)
        assert zg_out.shape == (B, dim_glob)
        assert zl_out.shape == (B, N, dim_loc)

        # bf16-operand / f32-accumulate path (MXU-native on v5e/v6e/v7x);
        # elementwise math stays f32, so check with a loose normalized bound.
        zg_bf, zl_bf = epic_forward(slab, z_glob, z_loc, dim_hidden=dim_hidden,
                                    num_layers=num_layers, pooling=pooling,
                                    compute_dtype=jnp.bfloat16)
        jax.block_until_ready((zg_bf, zl_bf))
        assert max_rel_err(zg_bf, zg_ref) < 0.1, max_rel_err(zg_bf, zg_ref)
        assert max_rel_err(zl_bf, zl_ref) < 0.1, max_rel_err(zl_bf, zl_ref)

    print("KERNEL_OK")
</pallas_src>

<mosaic_0001>
module attributes {stable_mosaic.version = 11 : i64} {
  func.func @kernel(%arg0: memref<2x16xf32, #tpu.memory_space<vmem>>, %arg1: memref<16x12xf32, #tpu.memory_space<vmem>>, %arg2: memref<512x128xf32, #tpu.memory_space<vmem>>, %arg3: memref<18x128xf32, #tpu.memory_space<vmem>>) attributes {dimension_semantics = [], scalar_prefetch = 0 : i64, scratch_operands = 0 : i64, tpu.core_type = #tpu.core_type<tc>} {
    %c0 = arith.constant 0 : index
    %c0_0 = arith.constant 0 : index
    %0 = vector.load %arg1[%c0, %c0_0] : memref<16x12xf32, #tpu.memory_space<vmem>>, vector<16x12xf32>
    %c0_1 = arith.constant 0 : index
    %c0_2 = arith.constant 0 : index
    %1 = vector.load %arg2[%c0_1, %c0_2] : memref<512x128xf32, #tpu.memory_space<vmem>>, vector<12x32xf32>
    %cst = arith.constant dense<0.000000e+00> : vector<16x32xf32>
    %2 = tpu.matmul %0, %1, %cst {dimension_numbers = #tpu.dot_dimension_numbers<[1], [0], [0], [1], [0, 0, 1, 1], [], []>} : vector<16x12xf32>, vector<12x32xf32>, vector<16x32xf32> -> vector<16x32xf32>
    %c16 = arith.constant 16 : index
    %c0_3 = arith.constant 0 : index
    %3 = vector.load %arg2[%c16, %c0_3] : memref<512x128xf32, #tpu.memory_space<vmem>>, vector<1x32xf32>
    %4 = vector.broadcast %3 : vector<1x32xf32> to vector<16x32xf32>
    %5 = arith.addf %2, %4 : vector<16x32xf32>
    %cst_4 = arith.constant 0.000000e+00 : f32
    %6 = vector.broadcast %cst_4 : f32 to vector<16x32xf32>
    %7 = arith.cmpf oge, %5, %6 : vector<16x32xf32>
    %cst_5 = arith.constant 0.00999999977 : f32
    %8 = vector.broadcast %cst_5 : f32 to vector<16x32xf32>
    %9 = arith.mulf %8, %5 : vector<16x32xf32>
    %10 = arith.select %7, %5, %9 : vector<16x32xi1>, vector<16x32xf32>
    %c0_6 = arith.constant 0 : index
    %c0_7 = arith.constant 0 : index
    %11 = vector.load %arg0[%c0_6, %c0_7] : memref<2x16xf32, #tpu.memory_space<vmem>>, vector<2x16xf32>
    %c24 = arith.constant 24 : index
    %c0_8 = arith.constant 0 : index
    %12 = vector.load %arg2[%c24, %c0_8] : memref<512x128xf32, #tpu.memory_space<vmem>>, vector<16x32xf32>
    %cst_9 = arith.constant dense<0.000000e+00> : vector<2x32xf32>
    %13 = tpu.matmul %11, %12, %cst_9 {dimension_numbers = #tpu.dot_dimension_numbers<[1], [0], [0], [1], [0, 0, 1, 1], [], []>} : vector<2x16xf32>, vector<16x32xf32>, vector<2x32xf32> -> vector<2x32xf32>
    %c40 = arith.constant 40 : index
    %c0_10 = arith.constant 0 : index
    %14 = vector.load %arg2[%c40, %c0_10] : memref<512x128xf32, #tpu.memory_space<vmem>>, vector<1x32xf32>
    %15 = vector.broadcast %14 : vector<1x32xf32> to vector<2x32xf32>
    %16 = arith.addf %13, %15 : vector<2x32xf32>
    %cst_11 = arith.constant 0.000000e+00 : f32
    %17 = vector.broadcast %cst_11 : f32 to vector<2x32xf32>
    %18 = arith.cmpf oge, %16, %17 : vector<2x32xf32>
    %cst_12 = arith.constant 0.00999999977 : f32
    %19 = vector.broadcast %cst_12 : f32 to vector<2x32xf32>
    %20 = arith.mulf %19, %16 : vector<2x32xf32>
    %21 = arith.select %18, %16, %20 : vector<2x32xi1>, vector<2x32xf32>
    %c48 = arith.constant 48 : index
    %c0_13 = arith.constant 0 : index
    %22 = vector.load %arg2[%c48, %c0_13] : memref<512x128xf32, #tpu.memory_space<vmem>>, vector<32x16xf32>
    %cst_14 = arith.constant dense<0.000000e+00> : vector<2x16xf32>
    %23 = tpu.matmul %21, %22, %cst_14 {dimension_numbers = #tpu.dot_dimension_numbers<[1], [0], [0], [1], [0, 0, 1, 1], [], []>} : vector<2x32xf32>, vector<32x16xf32>, vector<2x16xf32> -> vector<2x16xf32>
    %c80 = arith.constant 80 : index
    %c0_15 = arith.constant 0 : index
    %24 = vector.load %arg2[%c80, %c0_15] : memref<512x128xf32, #tpu.memory_space<vmem>>, vector<1x16xf32>
    %25 = vector.broadcast %24 : vector<1x16xf32> to vector<2x16xf32>
    %26 = arith.addf %23, %25 : vector<2x16xf32>
    %cst_16 = arith.constant 0.000000e+00 : f32
    %27 = vector.broadcast %cst_16 : f32 to vector<2x16xf32>
    %28 = arith.cmpf oge, %26, %27 : vector<2x16xf32>
    %cst_17 = arith.constant 0.00999999977 : f32
    %29 = vector.broadcast %cst_17 : f32 to vector<2x16xf32>
    %30 = arith.mulf %29, %26 : vector<2x16xf32>
    %31 = arith.select %28, %26, %30 : vector<2x16xi1>, vector<2x16xf32>
    %32 = vector.shape_cast %10 : vector<16x32xf32> to vector<2x8x32xf32>
    %cst_18 = arith.constant dense<0.000000e+00> : vector<2x32xf32>
    %33 = vector.multi_reduction <add>, %32, %cst_18 [1] : vector<2x8x32xf32> to vector<2x32xf32>
    %c88 = arith.constant 88 : index
    %c0_19 = arith.constant 0 : index
    %34 = vector.load %arg2[%c88, %c0_19] : memref<512x128xf32, #tpu.memory_space<vmem>>, vector<16x32xf32>
    %cst_20 = arith.constant dense<0.000000e+00> : vector<2x32xf32>
    %35 = tpu.matmul %31, %34, %cst_20 {dimension_numbers = #tpu.dot_dimension_numbers<[1], [0], [0], [1], [0, 0, 1, 1], [], []>} : vector<2x16xf32>, vector<16x32xf32>, vector<2x32xf32> -> vector<2x32xf32>
    %c104 = arith.constant 104 : index
    %c0_21 = arith.constant 0 : index
    %36 = vector.load %arg2[%c104, %c0_21] : memref<512x128xf32, #tpu.memory_space<vmem>>, vector<32x32xf32>
    %cst_22 = arith.constant dense<0.000000e+00> : vector<2x32xf32>
    %37 = tpu.matmul %33, %36, %cst_22 {dimension_numbers = #tpu.dot_dimension_numbers<[1], [0], [0], [1], [0, 0, 1, 1], [], []>} : vector<2x32xf32>, vector<32x32xf32>, vector<2x32xf32> -> vector<2x32xf32>
    %38 = arith.addf %35, %37 : vector<2x32xf32>
    %c136 = arith.constant 136 : index
    %c0_23 = arith.constant 0 : index
    %39 = vector.load %arg2[%c136, %c0_23] : memref<512x128xf32, #tpu.memory_space<vmem>>, vector<1x32xf32>
    %40 = vector.broadcast %39 : vector<1x32xf32> to vector<2x32xf32>
    %41 = arith.addf %38, %40 : vector<2x32xf32>
    %cst_24 = arith.constant 0.000000e+00 : f32
    %42 = vector.broadcast %cst_24 : f32 to vector<2x32xf32>
    %43 = arith.cmpf oge, %41, %42 : vector<2x32xf32>
    %cst_25 = arith.constant 0.00999999977 : f32
    %44 = vector.broadcast %cst_25 : f32 to vector<2x32xf32>
    %45 = arith.mulf %44, %41 : vector<2x32xf32>
    %46 = arith.select %43, %41, %45 : vector<2x32xi1>, vector<2x32xf32>
    %c144 = arith.constant 144 : index
    %c0_26 = arith.constant 0 : index
    %47 = vector.load %arg2[%c144, %c0_26] : memref<512x128xf32, #tpu.memory_space<vmem>>, vector<32x16xf32>
    %cst_27 = arith.constant dense<0.000000e+00> : vector<2x16xf32>
    %48 = tpu.matmul %46, %47, %cst_27 {dimension_numbers = #tpu.dot_dimension_numbers<[1], [0], [0], [1], [0, 0, 1, 1], [], []>} : vector<2x32xf32>, vector<32x16xf32>, vector<2x16xf32> -> vector<2x16xf32>
    %c176 = arith.constant 176 : index
    %c0_28 = arith.constant 0 : index
    %49 = vector.load %arg2[%c176, %c0_28] : memref<512x128xf32, #tpu.memory_space<vmem>>, vector<1x16xf32>
    %50 = vector.broadcast %49 : vector<1x16xf32> to vector<2x16xf32>
    %51 = arith.addf %48, %50 : vector<2x16xf32>
    %52 = arith.addf %51, %31 : vector<2x16xf32>
    %cst_29 = arith.constant 0.000000e+00 : f32
    %53 = vector.broadcast %cst_29 : f32 to vector<2x16xf32>
    %54 = arith.cmpf oge, %52, %53 : vector<2x16xf32>
    %cst_30 = arith.constant 0.00999999977 : f32
    %55 = vector.broadcast %cst_30 : f32 to vector<2x16xf32>
    %56 = arith.mulf %55, %52 : vector<2x16xf32>
    %57 = arith.select %54, %52, %56 : vector<2x16xi1>, vector<2x16xf32>
    %c216 = arith.constant 216 : index
    %c0_31 = arith.constant 0 : index
    %58 = vector.load %arg2[%c216, %c0_31] : memref<512x128xf32, #tpu.memory_space<vmem>>, vector<16x32xf32>
    %cst_32 = arith.constant dense<0.000000e+00> : vector<2x32xf32>
    %59 = tpu.matmul %57, %58, %cst_32 {dimension_numbers = #tpu.dot_dimension_numbers<[1], [0], [0], [1], [0, 0, 1, 1], [], []>} : vector<2x16xf32>, vector<16x32xf32>, vector<2x32xf32> -> vector<2x32xf32>
    %60 = vector.shape_cast %59 : vector<2x32xf32> to vector<2x1x32xf32>
    %61 = vector.shape_cast %60 : vector<2x1x32xf32> to vector<2x1x32xf32>
    %62 = vector.broadcast %61 : vector<2x1x32xf32> to vector<2x8x32xf32>
    %63 = vector.shape_cast %62 : vector<2x8x32xf32> to vector<16x32xf32>
    %c184 = arith.constant 184 : index
    %c0_33 = arith.constant 0 : index
    %64 = vector.load %arg2[%c184, %c0_33] : memref<512x128xf32, #tpu.memory_space<vmem>>, vector<32x32xf32>
    %cst_34 = arith.constant dense<0.000000e+00> : vector<16x32xf32>
    %65 = tpu.matmul %10, %64, %cst_34 {dimension_numbers = #tpu.dot_dimension_numbers<[1], [0], [0], [1], [0, 0, 1, 1], [], []>} : vector<16x32xf32>, vector<32x32xf32>, vector<16x32xf32> -> vector<16x32xf32>
    %66 = arith.addf %65, %63 : vector<16x32xf32>
    %c232 = arith.constant 232 : index
    %c0_35 = arith.constant 0 : index
    %67 = vector.load %arg2[%c232, %c0_35] : memref<512x128xf32, #tpu.memory_space<vmem>>, vector<1x32xf32>
    %68 = vector.broadcast %67 : vector<1x32xf32> to vector<16x32xf32>
    %69 = arith.addf %66, %68 : vector<16x32xf32>
    %cst_36 = arith.constant 0.000000e+00 : f32
    %70 = vector.broadcast %cst_36 : f32 to vector<16x32xf32>
    %71 = arith.cmpf oge, %69, %70 : vector<16x32xf32>
    %cst_37 = arith.constant 0.00999999977 : f32
    %72 = vector.broadcast %cst_37 : f32 to vector<16x32xf32>
    %73 = arith.mulf %72, %69 : vector<16x32xf32>
    %74 = arith.select %71, %69, %73 : vector<16x32xi1>, vector<16x32xf32>
    %c240 = arith.constant 240 : index
    %c0_38 = arith.constant 0 : index
    %75 = vector.load %arg2[%c240, %c0_38] : memref<512x128xf32, #tpu.memory_space<vmem>>, vector<32x32xf32>
    %cst_39 = arith.constant dense<0.000000e+00> : vector<16x32xf32>
    %76 = tpu.matmul %74, %75, %cst_39 {dimension_numbers = #tpu.dot_dimension_numbers<[1], [0], [0], [1], [0, 0, 1, 1], [], []>} : vector<16x32xf32>, vector<32x32xf32>, vector<16x32xf32> -> vector<16x32xf32>
    %c272 = arith.constant 272 : index
    %c0_40 = arith.constant 0 : index
    %77 = vector.load %arg2[%c272, %c0_40] : memref<512x128xf32, #tpu.memory_space<vmem>>, vector<1x32xf32>
    %78 = vector.broadcast %77 : vector<1x32xf32> to vector<16x32xf32>
    %79 = arith.addf %76, %78 : vector<16x32xf32>
    %80 = arith.addf %79, %10 : vector<16x32xf32>
    %cst_41 = arith.constant 0.000000e+00 : f32
    %81 = vector.broadcast %cst_41 : f32 to vector<16x32xf32>
    %82 = arith.cmpf oge, %80, %81 : vector<16x32xf32>
    %cst_42 = arith.constant 0.00999999977 : f32
    %83 = vector.broadcast %cst_42 : f32 to vector<16x32xf32>
    %84 = arith.mulf %83, %80 : vector<16x32xf32>
    %85 = arith.select %82, %80, %84 : vector<16x32xi1>, vector<16x32xf32>
    %86 = arith.addf %57, %31 : vector<2x16xf32>
    %87 = arith.addf %85, %10 : vector<16x32xf32>
    %88 = vector.shape_cast %87 : vector<16x32xf32> to vector<2x8x32xf32>
    %cst_43 = arith.constant dense<0.000000e+00> : vector<2x32xf32>
    %89 = vector.multi_reduction <add>, %88, %cst_43 [1] : vector<2x8x32xf32> to vector<2x32xf32>
    %c280 = arith.constant 280 : index
    %c0_44 = arith.constant 0 : index
    %90 = vector.load %arg2[%c280, %c0_44] : memref<512x128xf32, #tpu.memory_space<vmem>>, vector<16x32xf32>
    %cst_45 = arith.constant dense<0.000000e+00> : vector<2x32xf32>
    %91 = tpu.matmul %86, %90, %cst_45 {dimension_numbers = #tpu.dot_dimension_numbers<[1], [0], [0], [1], [0, 0, 1, 1], [], []>} : vector<2x16xf32>, vector<16x32xf32>, vector<2x32xf32> -> vector<2x32xf32>
    %c296 = arith.constant 296 : index
    %c0_46 = arith.constant 0 : index
    %92 = vector.load %arg2[%c296, %c0_46] : memref<512x128xf32, #tpu.memory_space<vmem>>, vector<32x32xf32>
    %cst_47 = arith.constant dense<0.000000e+00> : vector<2x32xf32>
    %93 = tpu.matmul %89, %92, %cst_47 {dimension_numbers = #tpu.dot_dimension_numbers<[1], [0], [0], [1], [0, 0, 1, 1], [], []>} : vector<2x32xf32>, vector<32x32xf32>, vector<2x32xf32> -> vector<2x32xf32>
    %94 = arith.addf %91, %93 : vector<2x32xf32>
    %c328 = arith.constant 328 : index
    %c0_48 = arith.constant 0 : index
    %95 = vector.load %arg2[%c328, %c0_48] : memref<512x128xf32, #tpu.memory_space<vmem>>, vector<1x32xf32>
    %96 = vector.broadcast %95 : vector<1x32xf32> to vector<2x32xf32>
    %97 = arith.addf %94, %96 : vector<2x32xf32>
    %cst_49 = arith.constant 0.000000e+00 : f32
    %98 = vector.broadcast %cst_49 : f32 to vector<2x32xf32>
    %99 = arith.cmpf oge, %97, %98 : vector<2x32xf32>
    %cst_50 = arith.constant 0.00999999977 : f32
    %100 = vector.broadcast %cst_50 : f32 to vector<2x32xf32>
    %101 = arith.mulf %100, %97 : vector<2x32xf32>
    %102 = arith.select %99, %97, %101 : vector<2x32xi1>, vector<2x32xf32>
    %c336 = arith.constant 336 : index
    %c0_51 = arith.constant 0 : index
    %103 = vector.load %arg2[%c336, %c0_51] : memref<512x128xf32, #tpu.memory_space<vmem>>, vector<32x16xf32>
    %cst_52 = arith.constant dense<0.000000e+00> : vector<2x16xf32>
    %104 = tpu.matmul %102, %103, %cst_52 {dimension_numbers = #tpu.dot_dimension_numbers<[1], [0], [0], [1], [0, 0, 1, 1], [], []>} : vector<2x32xf32>, vector<32x16xf32>, vector<2x16xf32> -> vector<2x16xf32>
    %c368 = arith.constant 368 : index
    %c0_53 = arith.constant 0 : index
    %105 = vector.load %arg2[%c368, %c0_53] : memref<512x128xf32, #tpu.memory_space<vmem>>, vector<1x16xf32>
    %106 = vector.broadcast %105 : vector<1x16xf32> to vector<2x16xf32>
    %107 = arith.addf %104, %106 : vector<2x16xf32>
    %108 = arith.addf %107, %86 : vector<2x16xf32>
    %cst_54 = arith.constant 0.000000e+00 : f32
    %109 = vector.broadcast %cst_54 : f32 to vector<2x16xf32>
    %110 = arith.cmpf oge, %108, %109 : vector<2x16xf32>
    %cst_55 = arith.constant 0.00999999977 : f32
    %111 = vector.broadcast %cst_55 : f32 to vector<2x16xf32>
    %112 = arith.mulf %111, %108 : vector<2x16xf32>
    %113 = arith.select %110, %108, %112 : vector<2x16xi1>, vector<2x16xf32>
    %c408 = arith.constant 408 : index
    %c0_56 = arith.constant 0 : index
    %114 = vector.load %arg2[%c408, %c0_56] : memref<512x128xf32, #tpu.memory_space<vmem>>, vector<16x32xf32>
    %cst_57 = arith.constant dense<0.000000e+00> : vector<2x32xf32>
    %115 = tpu.matmul %113, %114, %cst_57 {dimension_numbers = #tpu.dot_dimension_numbers<[1], [0], [0], [1], [0, 0, 1, 1], [], []>} : vector<2x16xf32>, vector<16x32xf32>, vector<2x32xf32> -> vector<2x32xf32>
    %116 = vector.shape_cast %115 : vector<2x32xf32> to vector<2x1x32xf32>
    %117 = vector.shape_cast %116 : vector<2x1x32xf32> to vector<2x1x32xf32>
    %118 = vector.broadcast %117 : vector<2x1x32xf32> to vector<2x8x32xf32>
    %119 = vector.shape_cast %118 : vector<2x8x32xf32> to vector<16x32xf32>
    %c376 = arith.constant 376 : index
    %c0_58 = arith.constant 0 : index
    %120 = vector.load %arg2[%c376, %c0_58] : memref<512x128xf32, #tpu.memory_space<vmem>>, vector<32x32xf32>
    %cst_59 = arith.constant dense<0.000000e+00> : vector<16x32xf32>
    %121 = tpu.matmul %87, %120, %cst_59 {dimension_numbers = #tpu.dot_dimension_numbers<[1], [0], [0], [1], [0, 0, 1, 1], [], []>} : vector<16x32xf32>, vector<32x32xf32>, vector<16x32xf32> -> vector<16x32xf32>
    %122 = arith.addf %121, %119 : vector<16x32xf32>
    %c424 = arith.constant 424 : index
    %c0_60 = arith.constant 0 : index
    %123 = vector.load %arg2[%c424, %c0_60] : memref<512x128xf32, #tpu.memory_space<vmem>>, vector<1x32xf32>
    %124 = vector.broadcast %123 : vector<1x32xf32> to vector<16x32xf32>
    %125 = arith.addf %122, %124 : vector<16x32xf32>
    %cst_61 = arith.constant 0.000000e+00 : f32
    %126 = vector.broadcast %cst_61 : f32 to vector<16x32xf32>
    %127 = arith.cmpf oge, %125, %126 : vector<16x32xf32>
    %cst_62 = arith.constant 0.00999999977 : f32
    %128 = vector.broadcast %cst_62 : f32 to vector<16x32xf32>
    %129 = arith.mulf %128, %125 : vector<16x32xf32>
    %130 = arith.select %127, %125, %129 : vector<16x32xi1>, vector<16x32xf32>
    %c432 = arith.constant 432 : index
    %c0_63 = arith.constant 0 : index
    %131 = vector.load %arg2[%c432, %c0_63] : memref<512x128xf32, #tpu.memory_space<vmem>>, vector<32x32xf32>
    %cst_64 = arith.constant dense<0.000000e+00> : vector<16x32xf32>
    %132 = tpu.matmul %130, %131, %cst_64 {dimension_numbers = #tpu.dot_dimension_numbers<[1], [0], [0], [1], [0, 0, 1, 1], [], []>} : vector<16x32xf32>, vector<32x32xf32>, vector<16x32xf32> -> vector<16x32xf32>
    %c464 = arith.constant 464 : index
    %c0_65 = arith.constant 0 : index
    %133 = vector.load %arg2[%c464, %c0_65] : memref<512x128xf32, #tpu.memory_space<vmem>>, vector<1x32xf32>
    %134 = vector.broadcast %133 : vector<1x32xf32> to vector<16x32xf32>
    %135 = arith.addf %132, %134 : vector<16x32xf32>
    %136 = arith.addf %135, %87 : vector<16x32xf32>
    %cst_66 = arith.constant 0.000000e+00 : f32
    %137 = vector.broadcast %cst_66 : f32 to vector<16x32xf32>
    %138 = arith.cmpf oge, %136, %137 : vector<16x32xf32>
    %cst_67 = arith.constant 0.00999999977 : f32
    %139 = vector.broadcast %cst_67 : f32 to vector<16x32xf32>
    %140 = arith.mulf %139, %136 : vector<16x32xf32>
    %141 = arith.select %138, %136, %140 : vector<16x32xi1>, vector<16x32xf32>
    %142 = arith.addf %113, %31 : vector<2x16xf32>
    %143 = arith.addf %141, %10 : vector<16x32xf32>
    %c472 = arith.constant 472 : index
    %c0_68 = arith.constant 0 : index
    %144 = vector.load %arg2[%c472, %c0_68] : memref<512x128xf32, #tpu.memory_space<vmem>>, vector<32x128xf32>
    %cst_69 = arith.constant dense<0.000000e+00> : vector<16x128xf32>
    %145 = tpu.matmul %143, %144, %cst_69 {dimension_numbers = #tpu.dot_dimension_numbers<[1], [0], [0], [1], [0, 0, 1, 1], [], []>} : vector<16x32xf32>, vector<32x128xf32>, vector<16x128xf32> -> vector<16x128xf32>
    %c504 = arith.constant 504 : index
    %c0_70 = arith.constant 0 : index
    %146 = vector.load %arg2[%c504, %c0_70] : memref<512x128xf32, #tpu.memory_space<vmem>>, vector<1x128xf32>
    %147 = vector.broadcast %146 : vector<1x128xf32> to vector<16x128xf32>
    %148 = arith.addf %145, %147 : vector<16x128xf32>
    %cst_71 = arith.constant 0.000000e+00 : f32
    %149 = vector.broadcast %cst_71 : f32 to vector<16x128xf32>
    %150 = arith.cmpf oge, %148, %149 : vector<16x128xf32>
    %cst_72 = arith.constant 0.00999999977 : f32
    %151 = vector.broadcast %cst_72 : f32 to vector<16x128xf32>
    %152 = arith.mulf %151, %148 : vector<16x128xf32>
    %153 = arith.select %150, %148, %152 : vector<16x128xi1>, vector<16x128xf32>
    %c0_73 = arith.constant 0 : index
    %c0_74 = arith.constant 0 : index
    %154 = vector.load %arg3[%c0_73, %c0_74] : memref<18x128xf32, #tpu.memory_space<vmem>>, vector<16x128xf32>
    tpu.vector_store %arg3[%c0_73, %c0_74], %153 {strides = array<i32>} : memref<18x128xf32, #tpu.memory_space<vmem>>, vector<16x128xf32>,
    %c16_75 = arith.constant 16 : index
    %c0_76 = arith.constant 0 : index
    %155 = vector.load %arg3[%c16_75, %c0_76] : memref<18x128xf32, #tpu.memory_space<vmem>>, vector<2x16xf32>
    tpu.vector_store %arg3[%c16_75, %c0_76], %142 {strides = array<i32>} : memref<18x128xf32, #tpu.memory_space<vmem>>, vector<2x16xf32>,
    return
  }
}

</mosaic_0001>

<llo_original>
// kernel: _epic_forward.1
$region0: #{_epic_forward.1}
  #allocation0 [shape = 'u32[]', space=smem, size = 0x4, offset = 0x4, fixed_abs, tag = 'smem constant byte address 0x4 - core index']
  #allocation1 [shape = 'u32[144,128]{1,0:T(1,128)}', space=vmem, size = 0x12000, scoped, tag = 'internal scratch']
  %s0 = inlined_call_operand.vmem [shape: f32[2,16], index: 0, kind: input, shape index: {}]
  %s1 = inlined_call_operand.hbm [shape: f32[16,12], index: 1, kind: input, shape index: {}]
  %s2 = inlined_call_operand.hbm [shape: f32[512,128], index: 2, kind: input, shape index: {}]
  %s3 = inlined_call_operand.vmem [shape: f32[18,128], index: 3, kind: output, shape index: {}]
  %s4 = sld [smem:[#allocation0]]
  $region30: #{_epic_forward.1} parent=0
    _
  %s6 = ssub.s32 1, %s4
  %s7 = scalar_select 0, %s6, %s4
  $region1: #{_epic_forward.1} parent=0
    #allocation2 [shape = 'u8[8192]{0}', space=vmem, size = 0x2000, scoped, tag = 'input window, operand 1, single buffered']
    #allocation3 [shape = 's32[1]{0}', space=sflag, size = 0x4, scoped, tag = 'scoped memory for _epic_forward.1']
    #allocation4 [shape = 'u8[262144]{0}', space=vmem, size = 0x40000, scoped, tag = 'input window, operand 2, single buffered']
    #allocation5 [shape = 's32[1]{0}', space=sflag, size = 0x4, scoped, tag = 'scoped memory for _epic_forward.1']
    %8 = vsyncpa [#allocation3], 0
    %9 = vsyncpa [#allocation5], 0
    // Predicated region
    $region2: #{_epic_forward.1} parent=1 // pred_check
      _
    $region3: #{_epic_forward.1} parent=1 // pred_check_branch
      %11 = sbr.rel (0) target = $region5
    $region4: #{_epic_forward.1} parent=1 // pred_region
      _
    $region5: #{_epic_forward.1} parent=1 // pred_fallthru
      _
    // Predicated region
    $region6: #{_epic_forward.1} parent=1 // pred_check
      _
    $region7: #{_epic_forward.1} parent=1 // pred_check_branch
      %13 = sbr.rel (0) target = $region9
    $region8: #{_epic_forward.1} parent=1 // pred_region
      %s15 = ssub.s32 256, 256
      %16 = vsyncadd [#allocation3], %s15
      %s17 = sshll.u32 [#allocation2], 4
      %s18 = int_to_ptr.vmem [resolvable:$true] %s17
      %23 = dma.hbm_to_vmem [thread:$0]  %s1, 256, %s18, [#allocation3], 128, 128, 8
    $region9: #{_epic_forward.1} parent=1 // pred_fallthru
      _
    // Predicated region
    $region10: #{_epic_forward.1} parent=1 // pred_check
      _
    $region11: #{_epic_forward.1} parent=1 // pred_check_branch
      %25 = sbr.rel (0) target = $region13
    $region12: #{_epic_forward.1} parent=1 // pred_region
      %s27 = ssub.s32 8192, 8192
      %28 = vsyncadd [#allocation5], %s27
      %s29 = sshll.u32 [#allocation4], 4
      %s30 = int_to_ptr.vmem [resolvable:$true] %s29
      %35 = dma.hbm_to_vmem [thread:$0]  %s2, 8192, %s30, [#allocation5], 128, 128, 8
    $region13: #{_epic_forward.1} parent=1 // pred_fallthru
      _
    // Predicated region
    $region14: #{_epic_forward.1} parent=1 // pred_check
      _
    $region15: #{_epic_forward.1} parent=1 // pred_check_branch
      %37 = sbr.rel (0) target = $region17
    $region16: #{_epic_forward.1} parent=1 // pred_region
      %38 = dma.done [#allocation3], 256
    $region17: #{_epic_forward.1} parent=1 // pred_fallthru
      _
    // Predicated region
    $region18: #{_epic_forward.1} parent=1 // pred_check
      _
    $region19: #{_epic_forward.1} parent=1 // pred_check_branch
      %40 = sbr.rel (0) target = $region21
    $region20: #{_epic_forward.1} parent=1 // pred_region
      %41 = dma.done [#allocation5], 8192
    $region21: #{_epic_forward.1} parent=1 // pred_fallthru
      _
    %v42 = vld [vmem:[#allocation2] sm:$0xff]
    %v43 = vld [vmem:[#allocation2 + $0x8] sm:$0xff]
    %v44 = vld [vmem:[#allocation4] sm:$0xff]
    %v45 = vld [vmem:[#allocation4 + $0x8] sm:$0xf]
    %v46 = vld [vmem:[#allocation4 + $0x10] sm:$0x1]
    %v47 = vlaneseq
    %v48 = vshrl.u32 %v47, 7
    %v49 = vsub.s32 0, %v48
    %v50 = vrot.slane %v46, %v49
    %vm51 = vcmask 97280
    %v53 = vsel %vm51, %v42, 0
    %v56 = vsel %vm51, %v43, 0
    %vm58 = vcmask 1043456
    %v60 = vsel %vm58, %v45, 0
    %62 = vmatprep.subr.mxu0 0.0
    %63 = vmatpush1.msra.mxu0 %v44
    %64 = vmatprep.subr.mxu0 0.0
    %65 = vmatpush1.msra.mxu0 %v60
    %66 = vmatprep.subr.mxu0 0.0
    %67 = vmatpush1.msra.mxu0 0.0
    %68 = vmatprep.subr.mxu0 0.0
    %69 = vmatpush1.msra.mxu0 0.0
    %70 = vmatprep.subr.mxu0 0.0
    %71 = vmatpush1.msra.mxu0 0.0
    %72 = vmatprep.subr.mxu0 0.0
    %73 = vmatpush1.msra.mxu0 0.0
    %74 = vmatprep.subr.mxu0 0.0
    %75 = vmatpush1.msra.mxu0 0.0
    %76 = vmatprep.subr.mxu0 0.0
    %77 = vmatpush1.msra.mxu0 0.0
    %78 = vmatprep.subr.mxu0 0.0
    %79 = vmatpush1.msra.mxu0 0.0
    %80 = vmatprep.subr.mxu0 0.0
    %81 = vmatpush1.msra.mxu0 0.0
    %82 = vmatprep.subr.mxu0 0.0
    %83 = vmatpush1.msra.mxu0 0.0
    %84 = vmatprep.subr.mxu0 0.0
    %85 = vmatpush1.msra.mxu0 0.0
    %86 = vmatprep.subr.mxu0 0.0
    %87 = vmatpush1.msra.mxu0 0.0
    %88 = vmatprep.subr.mxu0 0.0
    %89 = vmatpush1.msra.mxu0 0.0
    %90 = vmatprep.subr.mxu0 0.0
    %91 = vmatpush1.msra.mxu0 0.0
    %92 = vmatprep.subr.mxu0 0.0
    %93 = vmatpush1.msra.mxu0 0.0
    %94 = vmatprep.subr.mxu0 0.0
    %95 = vmatpush1.msra.mxu0 0.0
    %96 = vmatprep.subr.mxu0 0.0
    %97 = vmatpush1.msra.mxu0 0.0
    %98 = vmatprep.subr.mxu0 0.0
    %99 = vmatpush1.msra.mxu0 0.0
    %100 = vmatprep.subr.mxu0 0.0
    %101 = vmatpush1.msra.mxu0 0.0
    %102 = vmatprep.subr.mxu0 0.0
    %103 = vmatpush1.msra.mxu0 0.0
    %104 = vmatprep.subr.mxu0 0.0
    %105 = vmatpush1.msra.mxu0 0.0
    %106 = vmatprep.subr.mxu0 0.0
    %107 = vmatpush1.msra.mxu0 0.0
    %108 = vmatprep.subr.mxu0 0.0
    %109 = vmatpush1.msra.mxu0 0.0
    %110 = vmatprep.subr.mxu0 0.0
    %111 = vmatpush1.msra.mxu0 0.0
    %112 = vmatprep.subr.mxu0 0.0
    %113 = vmatpush1.msra.mxu0 0.0
    %114 = vmatprep.subr.mxu0 0.0
    %115 = vmatpush1.msra.mxu0 0.0
    %116 = vmatprep.subr.mxu0 0.0
    %117 = vmatpush1.msra.mxu0 0.0
    %118 = vmatprep.subr.mxu0 0.0
    %119 = vmatpush1.msra.mxu0 0.0
    %120 = vmatprep.subr.mxu0 0.0
    %121 = vmatpush1.msra.mxu0 0.0
    %122 = vmatprep.subr.mxu0 0.0
    %123 = vmatpush1.msra.mxu0 0.0
    %124 = vmatprep.subr.mxu0 0.0
    %125 = vmatpush1.msra.mxu0 0.0
    %126 = vmatprep.mubr.f32.mxu0 0.0
    %127 = vmatmul.mubr.f32.gmra.mrb[0].mxu0 %v53
    %v128 = vpop.f32.mrb[0].mxu0
    %v129 = vadd.f32 %v50, %v128
    %v130 = vpop.f32.mrb[0].mxu0
    %131 = vmatprep.mubr.f32.mxu0 0.0
    %132 = vmatmul.mubr.f32.gmra.mrb[0].mxu0 %v56
    %v133 = vpop.f32.mrb[0].mxu0
    %v134 = vadd.f32 %v50, %v133
    %v135 = vpop.f32.mrb[0].mxu0
    %136 = vdwg.mxu0
    %vm137 = vcmp.ge.f32.partialorder %v129, 0.0
    %vm138 = vcmp.ge.f32.partialorder %v134, 0.0
    %v139 = vmul.f32 %v129, 0.01
    %v140 = vmul.f32 %v134, 0.01
    %v141 = vsel %vm137, %v129, %v139
    %v142 = vsel %vm138, %v134, %v140
    %v143 = vld [vmem:[%s0] sm:$0x3]
    %v144 = vld [vmem:[#allocation4 + $0x18] sm:$0xff]
    %v145 = vld [vmem:[#allocation4 + $0x20] sm:$0xff]
    %v146 = vld [vmem:[#allocation4 + $0x28] sm:$0x1]
    %v147 = vlaneseq
    %v148 = vshrl.u32 %v147, 7
    %v149 = vsub.s32 0, %v148
    %v150 = vrot.slane %v146, %v149
    %vm151 = vcmask 130048
    %v153 = vsel %vm151, %v143, 0
    %155 = vmatprep.subr.mxu0 0.0
    %156 = vmatpush1.msra.mxu0 %v144
    %157 = vmatprep.subr.mxu0 0.0
    %158 = vmatpush1.msra.mxu0 %v145
    %159 = vmatprep.subr.mxu0 0.0
    %160 = vmatpush1.msra.mxu0 0.0
    %161 = vmatprep.subr.mxu0 0.0
    %162 = vmatpush1.msra.mxu0 0.0
    %163 = vmatprep.subr.mxu0 0.0
    %164 = vmatpush1.msra.mxu0 0.0
    %165 = vmatprep.subr.mxu0 0.0
    %166 = vmatpush1.msra.mxu0 0.0
    %167 = vmatprep.subr.mxu0 0.0
    %168 = vmatpush1.msra.mxu0 0.0
    %169 = vmatprep.subr.mxu0 0.0
    %170 = vmatpush1.msra.mxu0 0.0
    %171 = vmatprep.subr.mxu0 0.0
    %172 = vmatpush1.msra.mxu0 0.0
    %173 = vmatprep.subr.mxu0 0.0
    %174 = vmatpush1.msra.mxu0 0.0
    %175 = vmatprep.subr.mxu0 0.0
    %176 = vmatpush1.msra.mxu0 0.0
    %177 = vmatprep.subr.mxu0 0.0
    %178 = vmatpush1.msra.mxu0 0.0
    %179 = vmatprep.subr.mxu0 0.0
    %180 = vmatpush1.msra.mxu0 0.0
    %181 = vmatprep.subr.mxu0 0.0
    %182 = vmatpush1.msra.mxu0 0.0
    %183 = vmatprep.subr.mxu0 0.0
    %184 = vmatpush1.msra.mxu0 0.0
    %185 = vmatprep.subr.mxu0 0.0
    %186 = vmatpush1.msra.mxu0 0.0
    %187 = vmatprep.subr.mxu0 0.0
    %188 = vmatpush1.msra.mxu0 0.0
    %189 = vmatprep.subr.mxu0 0.0
    %190 = vmatpush1.msra.mxu0 0.0
    %191 = vmatprep.subr.mxu0 0.0
    %192 = vmatpush1.msra.mxu0 0.0
    %193 = vmatprep.subr.mxu0 0.0
    %194 = vmatpush1.msra.mxu0 0.0
    %195 = vmatprep.subr.mxu0 0.0
    %196 = vmatpush1.msra.mxu0 0.0
    %197 = vmatprep.subr.mxu0 0.0
    %198 = vmatpush1.msra.mxu0 0.0
    %199 = vmatprep.subr.mxu0 0.0
    %200 = vmatpush1.msra.mxu0 0.0
    %201 = vmatprep.subr.mxu0 0.0
    %202 = vmatpush1.msra.mxu0 0.0
    %203 = vmatprep.subr.mxu0 0.0
    %204 = vmatpush1.msra.mxu0 0.0
    %205 = vmatprep.subr.mxu0 0.0
    %206 = vmatpush1.msra.mxu0 0.0
    %207 = vmatprep.subr.mxu0 0.0
    %208 = vmatpush1.msra.mxu0 0.0
    %209 = vmatprep.subr.mxu0 0.0
    %210 = vmatpush1.msra.mxu0 0.0
    %211 = vmatprep.subr.mxu0 0.0
    %212 = vmatpush1.msra.mxu0 0.0
    %213 = vmatprep.subr.mxu0 0.0
    %214 = vmatpush1.msra.mxu0 0.0
    %215 = vmatprep.subr.mxu0 0.0
    %216 = vmatpush1.msra.mxu0 0.0
    %217 = vmatprep.subr.mxu0 0.0
    %218 = vmatpush1.msra.mxu0 0.0
    %219 = vmatprep.mubr.f32.mxu0 0.0
    %220 = vmatmul.mubr.f32.gmra.mrb[0].mxu0 %v153
    %v221 = vpop.f32.mrb[0].mxu0
    %v222 = vadd.f32 %v150, %v221
    %v223 = vpop.f32.mrb[0].mxu0
    %224 = vdwg.mxu0
    %vm225 = vcmp.ge.f32.partialorder %v222, 0.0
    %v226 = vmul.f32 %v222, 0.01
    %v227 = vsel %vm225, %v222, %v226
    %v228 = vld [vmem:[#allocation4 + $0x30] sm:$0xff]
    %v229 = vld [vmem:[#allocation4 + $0x38] sm:$0xff]
    %v230 = vld [vmem:[#allocation4 + $0x40] sm:$0xff]
    %v231 = vld [vmem:[#allocation4 + $0x48] sm:$0xff]
    %v232 = vld [vmem:[#allocation4 + $0x50] sm:$0x1]
    %v233 = vlaneseq
    %v234 = vshrl.u32 %v233, 7
    %v235 = vsub.s32 0, %v234
    %v236 = vrot.slane %v232, %v235
    %vm237 = vcmask 261120
    %v239 = vsel %vm237, %v227, 0
    %241 = vmatprep.subr.mxu0 0.0
    %242 = vmatpush1.msra.mxu0 %v228
    %243 = vmatprep.subr.mxu0 0.0
    %244 = vmatpush1.msra.mxu0 %v229
    %245 = vmatprep.subr.mxu0 0.0
    %246 = vmatpush1.msra.mxu0 %v230
    %247 = vmatprep.subr.mxu0 0.0
    %248 = vmatpush1.msra.mxu0 %v231
    %249 = vmatprep.subr.mxu0 0.0
    %250 = vmatpush1.msra.mxu0 0.0
    %251 = vmatprep.subr.mxu0 0.0
    %252 = vmatpush1.msra.mxu0 0.0
    %253 = vmatprep.subr.mxu0 0.0
    %254 = vmatpush1.msra.mxu0 0.0
    %255 = vmatprep.subr.mxu0 0.0
    %256 = vmatpush1.msra.mxu0 0.0
    %257 = vmatprep.subr.mxu0 0.0
    %258 = vmatpush1.msra.mxu0 0.0
    %259 = vmatprep.subr.mxu0 0.0
    %260 = vmatpush1.msra.mxu0 0.0
    %261 = vmatprep.subr.mxu0 0.0
    %262 = vmatpush1.msra.mxu0 0.0
    %263 = vmatprep.subr.mxu0 0.0
    %264 = vmatpush1.msra.mxu0 0.0
    %265 = vmatprep.subr.mxu0 0.0
    %266 = vmatpush1.msra.mxu0 0.0
    %267 = vmatprep.subr.mxu0 0.0
    %268 = vmatpush1.msra.mxu0 0.0
    %269 = vmatprep.subr.mxu0 0.0
    %270 = vmatpush1.msra.mxu0 0.0
    %271 = vmatprep.subr.mxu0 0.0
    %272 = vmatpush1.msra.mxu0 0.0
    %273 = vmatprep.subr.mxu0 0.0
    %274 = vmatpush1.msra.mxu0 0.0
    %275 = vmatprep.subr.mxu0 0.0
    %276 = vmatpush1.msra.mxu0 0.0
    %277 = vmatprep.subr.mxu0 0.0
    %278 = vmatpush1.msra.mxu0 0.0
    %279 = vmatprep.subr.mxu0 0.0
    %280 = vmatpush1.msra.mxu0 0.0
    %281 = vmatprep.subr.mxu0 0.0
    %282 = vmatpush1.msra.mxu0 0.0
    %283 = vmatprep.subr.mxu0 0.0
    %284 = vmatpush1.msra.mxu0 0.0
    %285 = vmatprep.subr.mxu0 0.0
    %286 = vmatpush1.msra.mxu0 0.0
    %287 = vmatprep.subr.mxu0 0.0
    %288 = vmatpush1.msra.mxu0 0.0
    %289 = vmatprep.subr.mxu0 0.0
    %290 = vmatpush1.msra.mxu0 0.0
    %291 = vmatprep.subr.mxu0 0.0
    %292 = vmatpush1.msra.mxu0 0.0
    %293 = vmatprep.subr.mxu0 0.0
    %294 = vmatpush1.msra.mxu0 0.0
    %295 = vmatprep.subr.mxu0 0.0
    %296 = vmatpush1.msra.mxu0 0.0
    %297 = vmatprep.subr.mxu0 0.0
    %298 = vmatpush1.msra.mxu0 0.0
    %299 = vmatprep.subr.mxu0 0.0
    %300 = vmatpush1.msra.mxu0 0.0
    %301 = vmatprep.subr.mxu0 0.0
    %302 = vmatpush1.msra.mxu0 0.0
    %303 = vmatprep.subr.mxu0 0.0
    %304 = vmatpush1.msra.mxu0 0.0
    %305 = vmatprep.mubr.f32.mxu0 0.0
    %306 = vmatmul.mubr.f32.gmra.mrb[0].mxu0 %v239
    %v307 = vpop.f32.mrb[0].mxu0
    %v308 = vadd.f32 %v236, %v307
    %v309 = vpop.f32.mrb[0].mxu0
    %310 = vdwg.mxu0
    %vm311 = vcmp.ge.f32.partialorder %v308, 0.0
    %v312 = vmul.f32 %v308, 0.01
    %v313 = vsel %vm311, %v308, %v312
    %v314 = vsel %vm237, %v141, 0.0
    %v315 = vrot.slane %v314, 4
    %v316 = vadd.f32 %v314, %v315
    %v317 = vrot.slane %v316, 2
    %v318 = vadd.f32 %v316, %v317
    %v319 = vrot.slane %v318, 1
    %v320 = vadd.f32 %v318, %v319
    %v321 = vsel %vm237, %v142, 0.0
    %v322 = vrot.slane %v321, 4
    %v323 = vadd.f32 %v321, %v322
    %v324 = vrot.slane %v323, 2
    %v325 = vadd.f32 %v323, %v324
    %v326 = vrot.slane %v325, 1
    %v327 = vadd.f32 %v325, %v326
    %v328 = vld [vmem:[#allocation4 + $0x58] sm:$0xff]
    %v329 = vld [vmem:[#allocation4 + $0x60] sm:$0xff]
    %v330 = vld [vmem:[#allocation4 + $0x68] sm:$0xff]
    %v331 = vld [vmem:[#allocation4 + $0x70] sm:$0xff]
    %v332 = vld [vmem:[#allocation4 + $0x78] sm:$0xff]
    %v333 = vld [vmem:[#allocation4 + $0x80] sm:$0xff]
    %vm336 = vcmask 1041409
    %v337 = vsel %vm336, %v327, %v320
    %v338 = vsel %vm237, %v337, 0
    %340 = vmatprep.subr.mxu0 0.0
    %341 = vmatpush1.msra.mxu0 %v330
    %342 = vmatprep.subr.mxu0 0.0
    %343 = vmatpush1.msra.mxu0 %v331
    %344 = vmatprep.subr.mxu0 0.0
    %345 = vmatpush1.msra.mxu0 %v332
    %346 = vmatprep.subr.mxu0 0.0
    %347 = vmatpush1.msra.mxu0 %v333
    %348 = vmatprep.subr.mxu0 0.0
    %349 = vmatpush1.msra.mxu0 0.0
    %350 = vmatprep.subr.mxu0 0.0
    %351 = vmatpush1.msra.mxu0 0.0
    %352 = vmatprep.subr.mxu0 0.0
    %353 = vmatpush1.msra.mxu0 0.0
    %354 = vmatprep.subr.mxu0 0.0
    %355 = vmatpush1.msra.mxu0 0.0
    %356 = vmatprep.subr.mxu0 0.0
    %357 = vmatpush1.msra.mxu0 0.0
    %358 = vmatprep.subr.mxu0 0.0
    %359 = vmatpush1.msra.mxu0 0.0
    %360 = vmatprep.subr.mxu0 0.0
    %361 = vmatpush1.msra.mxu0 0.0
    %362 = vmatprep.subr.mxu0 0.0
    %363 = vmatpush1.msra.mxu0 0.0
    %364 = vmatprep.subr.mxu0 0.0
    %365 = vmatpush1.msra.mxu0 0.0
    %366 = vmatprep.subr.mxu0 0.0
    %367 = vmatpush1.msra.mxu0 0.0
    %368 = vmatprep.subr.mxu0 0.0
    %369 = vmatpush1.msra.mxu0 0.0
    %370 = vmatprep.subr.mxu0 0.0
    %371 = vmatpush1.msra.mxu0 0.0
    %372 = vmatprep.subr.mxu0 0.0
    %373 = vmatpush1.msra.mxu0 0.0
    %374 = vmatprep.subr.mxu0 0.0
    %375 = vmatpush1.msra.mxu0 0.0
    %376 = vmatprep.subr.mxu0 0.0
    %377 = vmatpush1.msra.mxu0 0.0
    %378 = vmatprep.subr.mxu0 0.0
    %379 = vmatpush1.msra.mxu0 0.0
    %380 = vmatprep.subr.mxu0 0.0
    %381 = vmatpush1.msra.mxu0 0.0
    %382 = vmatprep.subr.mxu0 0.0
    %383 = vmatpush1.msra.mxu0 0.0
    %384 = vmatprep.subr.mxu0 0.0
    %385 = vmatpush1.msra.mxu0 0.0
    %386 = vmatprep.subr.mxu0 0.0
    %387 = vmatpush1.msra.mxu0 0.0
    %388 = vmatprep.subr.mxu0 0.0
    %389 = vmatpush1.msra.mxu0 0.0
    %390 = vmatprep.subr.mxu0 0.0
    %391 = vmatpush1.msra.mxu0 0.0
    %392 = vmatprep.subr.mxu0 0.0
    %393 = vmatpush1.msra.mxu0 0.0
    %394 = vmatprep.subr.mxu0 0.0
    %395 = vmatpush1.msra.mxu0 0.0
    %396 = vmatprep.subr.mxu0 0.0
    %397 = vmatpush1.msra.mxu0 0.0
    %398 = vmatprep.subr.mxu0 0.0
    %399 = vmatpush1.msra.mxu0 0.0
    %400 = vmatprep.subr.mxu0 0.0
    %401 = vmatpush1.msra.mxu0 0.0
    %402 = vmatprep.subr.mxu0 0.0
    %403 = vmatpush1.msra.mxu0 0.0
    %404 = vmatprep.mubr.f32.mxu0 0.0
    %405 = vmatmul.mubr.f32.gmra.mrb[0].mxu0 %v338
    %v406 = vpop.f32.mrb[0].mxu0
    %v407 = vadd.f32 0.0, %v406
    %v408 = vpop.f32.mrb[0].mxu0
    %409 = vdwg.mxu0
    %v411 = vsel %vm151, %v313, 0
    %413 = vmatprep.subr.mxu0 0.0
    %414 = vmatpush1.msra.mxu0 %v328
    %415 = vmatprep.subr.mxu0 0.0
    %416 = vmatpush1.msra.mxu0 %v329
    %417 = vmatprep.subr.mxu0 0.0
    %418 = vmatpush1.msra.mxu0 0.0
    %419 = vmatprep.subr.mxu0 0.0
    %420 = vmatpush1.msra.mxu0 0.0
    %421 = vmatprep.subr.mxu0 0.0
    %422 = vmatpush1.msra.mxu0 0.0
    %423 = vmatprep.subr.mxu0 0.0
    %424 = vmatpush1.msra.mxu0 0.0
    %425 = vmatprep.subr.mxu0 0.0
    %426 = vmatpush1.msra.mxu0 0.0
    %427 = vmatprep.subr.mxu0 0.0
    %428 = vmatpush1.msra.mxu0 0.0
    %429 = vmatprep.subr.mxu0 0.0
    %430 = vmatpush1.msra.mxu0 0.0
    %431 = vmatprep.subr.mxu0 0.0
    %432 = vmatpush1.msra.mxu0 0.0
    %433 = vmatprep.subr.mxu0 0.0
    %434 = vmatpush1.msra.mxu0 0.0
    %435 = vmatprep.subr.mxu0 0.0
    %436 = vmatpush1.msra.mxu0 0.0
    %437 = vmatprep.subr.mxu0 0.0
    %438 = vmatpush1.msra.mxu0 0.0
    %439 = vmatprep.subr.mxu0 0.0
    %440 = vmatpush1.msra.mxu0 0.0
    %441 = vmatprep.subr.mxu0 0.0
    %442 = vmatpush1.msra.mxu0 0.0
    %443 = vmatprep.subr.mxu0 0.0
    %444 = vmatpush1.msra.mxu0 0.0
    %445 = vmatprep.subr.mxu0 0.0
    %446 = vmatpush1.msra.mxu0 0.0
    %447 = vmatprep.subr.mxu0 0.0
    %448 = vmatpush1.msra.mxu0 0.0
    %449 = vmatprep.subr.mxu0 0.0
    %450 = vmatpush1.msra.mxu0 0.0
    %451 = vmatprep.subr.mxu0 0.0
    %452 = vmatpush1.msra.mxu0 0.0
    %453 = vmatprep.subr.mxu0 0.0
    %454 = vmatpush1.msra.mxu0 0.0
    %455 = vmatprep.subr.mxu0 0.0
    %456 = vmatpush1.msra.mxu0 0.0
    %457 = vmatprep.subr.mxu0 0.0
    %458 = vmatpush1.msra.mxu0 0.0
    %459 = vmatprep.subr.mxu0 0.0
    %460 = vmatpush1.msra.mxu0 0.0
    %461 = vmatprep.subr.mxu0 0.0
    %462 = vmatpush1.msra.mxu0 0.0
    %463 = vmatprep.subr.mxu0 0.0
    %464 = vmatpush1.msra.mxu0 0.0
    %465 = vmatprep.subr.mxu0 0.0
    %466 = vmatpush1.msra.mxu0 0.0
    %467 = vmatprep.subr.mxu0 0.0
    %468 = vmatpush1.msra.mxu0 0.0
    %469 = vmatprep.subr.mxu0 0.0
    %470 = vmatpush1.msra.mxu0 0.0
    %471 = vmatprep.subr.mxu0 0.0
    %472 = vmatpush1.msra.mxu0 0.0
    %473 = vmatprep.subr.mxu0 0.0
    %474 = vmatpush1.msra.mxu0 0.0
    %475 = vmatprep.subr.mxu0 0.0
    %476 = vmatpush1.msra.mxu0 0.0
    %477 = vmatprep.mubr.f32.mxu0 0.0
    %478 = vmatmul.mubr.f32.gmra.mrb[0].mxu0 %v411
    %v479 = vpop.f32.mrb[0].mxu0
    %v480 = vadd.f32 %v407, %v479
    %v481 = vpop.f32.mrb[0].mxu0
    %482 = vdwg.mxu0
    %v483 = vld [vmem:[#allocation4 + $0x88] sm:$0x1]
    %v484 = vlaneseq
    %v485 = vshrl.u32 %v484, 7
    %v486 = vsub.s32 0, %v485
    %v487 = vrot.slane %v483, %v486
    %v488 = vadd.f32 %v480, %v487
    %vm489 = vcmp.ge.f32.partialorder %v488, 0.0
    %v490 = vmul.f32 %v488, 0.01
    %v491 = vsel %vm489, %v488, %v490
    %v492 = vld [vmem:[#allocation4 + $0x90] sm:$0xff]
    %v493 = vld [vmem:[#allocation4 + $0x98] sm:$0xff]
    %v494 = vld [vmem:[#allocation4 + $0xa0] sm:$0xff]
    %v495 = vld [vmem:[#allocation4 + $0xa8] sm:$0xff]
    %v496 = vld [vmem:[#allocation4 + $0xb0] sm:$0x1]
    %v497 = vlaneseq
    %v498 = vshrl.u32 %v497, 7
    %v499 = vsub.s32 0, %v498
    %v500 = vrot.slane %v496, %v499
    %v502 = vsel %vm237, %v491, 0
    %504 = vmatprep.subr.mxu0 0.0
    %505 = vmatpush1.msra.mxu0 %v492
    %506 = vmatprep.subr.mxu0 0.0
    %507 = vmatpush1.msra.mxu0 %v493
    %508 = vmatprep.subr.mxu0 0.0
    %509 = vmatpush1.msra.mxu0 %v494
    %510 = vmatprep.subr.mxu0 0.0
    %511 = vmatpush1.msra.mxu0 %v495
    %512 = vmatprep.subr.mxu0 0.0
    %513 = vmatpush1.msra.mxu0 0.0
    %514 = vmatprep.subr.mxu0 0.0
    %515 = vmatpush1.msra.mxu0 0.0
    %516 = vmatprep.subr.mxu0 0.0
    %517 = vmatpush1.msra.mxu0 0.0
    %518 = vmatprep.subr.mxu0 0.0
    %519 = vmatpush1.msra.mxu0 0.0
    %520 = vmatprep.subr.mxu0 0.0
    %521 = vmatpush1.msra.mxu0 0.0
    %522 = vmatprep.subr.mxu0 0.0
    %523 = vmatpush1.msra.mxu0 0.0
    %524 = vmatprep.subr.mxu0 0.0
    %525 = vmatpush1.msra.mxu0 0.0
    %526 = vmatprep.subr.mxu0 0.0
    %527 = vmatpush1.msra.mxu0 0.0
    %528 = vmatprep.subr.mxu0 0.0
    %529 = vmatpush1.msra.mxu0 0.0
    %530 = vmatprep.subr.mxu0 0.0
    %531 = vmatpush1.msra.mxu0 0.0
    %532 = vmatprep.subr.mxu0 0.0
    %533 = vmatpush1.msra.mxu0 0.0
    %534 = vmatprep.subr.mxu0 0.0
    %535 = vmatpush1.msra.mxu0 0.0
    %536 = vmatprep.subr.mxu0 0.0
    %537 = vmatpush1.msra.mxu0 0.0
    %538 = vmatprep.subr.mxu0 0.0
    %539 = vmatpush1.msra.mxu0 0.0
    %540 = vmatprep.subr.mxu0 0.0
    %541 = vmatpush1.msra.mxu0 0.0
    %542 = vmatprep.subr.mxu0 0.0
    %543 = vmatpush1.msra.mxu0 0.0
    %544 = vmatprep.subr.mxu0 0.0
    %545 = vmatpush1.msra.mxu0 0.0
    %546 = vmatprep.subr.mxu0 0.0
    %547 = vmatpush1.msra.mxu0 0.0
    %548 = vmatprep.subr.mxu0 0.0
    %549 = vmatpush1.msra.mxu0 0.0
    %550 = vmatprep.subr.mxu0 0.0
    %551 = vmatpush1.msra.mxu0 0.0
    %552 = vmatprep.subr.mxu0 0.0
    %553 = vmatpush1.msra.mxu0 0.0
    %554 = vmatprep.subr.mxu0 0.0
    %555 = vmatpush1.msra.mxu0 0.0
    %556 = vmatprep.subr.mxu0 0.0
    %557 = vmatpush1.msra.mxu0 0.0
    %558 = vmatprep.subr.mxu0 0.0
    %559 = vmatpush1.msra.mxu0 0.0
    %560 = vmatprep.subr.mxu0 0.0
    %561 = vmatpush1.msra.mxu0 0.0
    %562 = vmatprep.subr.mxu0 0.0
    %563 = vmatpush1.msra.mxu0 0.0
    %564 = vmatprep.subr.mxu0 0.0
    %565 = vmatpush1.msra.mxu0 0.0
    %566 = vmatprep.subr.mxu0 0.0
    %567 = vmatpush1.msra.mxu0 0.0
    %568 = vmatprep.mubr.f32.mxu0 0.0
    %569 = vmatmul.mubr.f32.gmra.mrb[0].mxu0 %v502
    %v570 = vpop.f32.mrb[0].mxu0
    %v571 = vadd.f32 %v500, %v570
    %v572 = vpop.f32.mrb[0].mxu0
    %573 = vdwg.mxu0
    %v574 = vadd.f32 %v571, %v313
    %vm575 = vcmp.ge.f32.partialorder %v574, 0.0
    %v576 = vmul.f32 %v574, 0.01
    %v577 = vsel %vm575, %v574, %v576
    %v578 = vld [vmem:[#allocation4 + $0xd8] sm:$0xff]
    %v579 = vld [vmem:[#allocation4 + $0xe0] sm:$0xff]
    %v581 = vsel %vm151, %v577, 0
    %583 = vmatprep.subr.mxu0 0.0
    %584 = vmatpush1.msra.mxu0 %v578
    %585 = vmatprep.subr.mxu0 0.0
    %586 = vmatpush1.msra.mxu0 %v579
    %587 = vmatprep.subr.mxu0 0.0
    %588 = vmatpush1.msra.mxu0 0.0
    %589 = vmatprep.subr.mxu0 0.0
    %590 = vmatpush1.msra.mxu0 0.0
    %591 = vmatprep.subr.mxu0 0.0
    %592 = vmatpush1.msra.mxu0 0.0
    %593 = vmatprep.subr.mxu0 0.0
    %594 = vmatpush1.msra.mxu0 0.0
    %595 = vmatprep.subr.mxu0 0.0
    %596 = vmatpush1.msra.mxu0 0.0
    %597 = vmatprep.subr.mxu0 0.0
    %598 = vmatpush1.msra.mxu0 0.0
    %599 = vmatprep.subr.mxu0 0.0
    %600 = vmatpush1.msra.mxu0 0.0
    %601 = vmatprep.subr.mxu0 0.0
    %602 = vmatpush1.msra.mxu0 0.0
    %603 = vmatprep.subr.mxu0 0.0
    %604 = vmatpush1.msra.mxu0 0.0
    %605 = vmatprep.subr.mxu0 0.0
    %606 = vmatpush1.msra.mxu0 0.0
    %607 = vmatprep.subr.mxu0 0.0
    %608 = vmatpush1.msra.mxu0 0.0
    %609 = vmatprep.subr.mxu0 0.0
    %610 = vmatpush1.msra.mxu0 0.0
    %611 = vmatprep.subr.mxu0 0.0
    %612 = vmatpush1.msra.mxu0 0.0
    %613 = vmatprep.subr.mxu0 0.0
    %614 = vmatpush1.msra.mxu0 0.0
    %615 = vmatprep.subr.mxu0 0.0
    %616 = vmatpush1.msra.mxu0 0.0
    %617 = vmatprep.subr.mxu0 0.0
    %618 = vmatpush1.msra.mxu0 0.0
    %619 = vmatprep.subr.mxu0 0.0
    %620 = vmatpush1.msra.mxu0 0.0
    %621 = vmatprep.subr.mxu0 0.0
    %622 = vmatpush1.msra.mxu0 0.0
    %623 = vmatprep.subr.mxu0 0.0
    %624 = vmatpush1.msra.mxu0 0.0
    %625 = vmatprep.subr.mxu0 0.0
    %626 = vmatpush1.msra.mxu0 0.0
    %627 = vmatprep.subr.mxu0 0.0
    %628 = vmatpush1.msra.mxu0 0.0
    %629 = vmatprep.subr.mxu0 0.0
    %630 = vmatpush1.msra.mxu0 0.0
    %631 = vmatprep.subr.mxu0 0.0
    %632 = vmatpush1.msra.mxu0 0.0
    %633 = vmatprep.subr.mxu0 0.0
    %634 = vmatpush1.msra.mxu0 0.0
    %635 = vmatprep.subr.mxu0 0.0
    %636 = vmatpush1.msra.mxu0 0.0
    %637 = vmatprep.subr.mxu0 0.0
    %638 = vmatpush1.msra.mxu0 0.0
    %639 = vmatprep.subr.mxu0 0.0
    %640 = vmatpush1.msra.mxu0 0.0
    %641 = vmatprep.subr.mxu0 0.0
    %642 = vmatpush1.msra.mxu0 0.0
    %643 = vmatprep.subr.mxu0 0.0
    %644 = vmatpush1.msra.mxu0 0.0
    %645 = vmatprep.subr.mxu0 0.0
    %646 = vmatpush1.msra.mxu0 0.0
    %647 = vmatprep.mubr.f32.mxu0 0.0
    %648 = vmatmul.mubr.f32.gmra.mrb[0].mxu0 %v581
    %v649 = vpop.f32.mrb[0].mxu0
    %v650 = vadd.f32 0.0, %v649
    %v651 = vpop.f32.mrb[0].mxu0
    %652 = vdwg.mxu0
    %v655 = vunpack.c.l.s4 1966171168
    %v656 = vunpack.c.0.s8 %v655
    %v657 = vlaneseq
    %v658 = vshrl.u32 %v657, 7
    %v659 = vsub.s32 %v656, %v658
    %v660 = vrot.slane %v650, %v659
    %v661 = vcombine.high %v660, %v660
    %v663 = vunpack.c.l.s4 1966171168
    %v664 = vunpack.c.0.s8 %v663
    %v665 = vlaneseq
    %v666 = vshrl.u32 %v665, 7
    %v667 = vsub.s32 %v664, %v666
    %v668 = vrot.slane %v660, %v667
    %v670 = vunpack.c.l.s4 1966171168
    %v671 = vunpack.c.0.s8 %v670
    %v672 = vlaneseq
    %v673 = vshrl.u32 %v672, 7
    %v674 = vsub.s32 %v671, %v673
    %v675 = vrot.slane %v661, %v674
    %v676 = vlaneseq
    %v677 = vshrl.u32 %v676, 7
    %v678 = vsub.s32 0, %v677
    %v679 = vrot.slane %v668, %v678
    %v680 = vlaneseq
    %v681 = vshrl.u32 %v680, 7
    %v682 = vsub.s32 0, %v681
    %v683 = vrot.slane %v675, %v682
    %v686 = vld [vmem:[#allocation4 + $0xb8] sm:$0xff]
    %v687 = vld [vmem:[#allocation4 + $0xc0] sm:$0xff]
    %v688 = vld [vmem:[#allocation4 + $0xc8] sm:$0xff]
    %v689 = vld [vmem:[#allocation4 + $0xd0] sm:$0xff]
    %v691 = vsel %vm237, %v141, 0
    %v694 = vsel %vm237, %v142, 0
    %696 = vmatprep.subr.mxu0 0.0
    %697 = vmatpush1.msra.mxu0 %v686
    %698 = vmatprep.subr.mxu0 0.0
    %699 = vmatpush1.msra.mxu0 %v687
    %700 = vmatprep.subr.mxu0 0.0
    %701 = vmatpush1.msra.mxu0 %v688
    %702 = vmatprep.subr.mxu0 0.0
    %703 = vmatpush1.msra.mxu0 %v689
    %704 = vmatprep.subr.mxu0 0.0
    %705 = vmatpush1.msra.mxu0 0.0
    %706 = vmatprep.subr.mxu0 0.0
    %707 = vmatpush1.msra.mxu0 0.0
    %708 = vmatprep.subr.mxu0 0.0
    %709 = vmatpush1.msra.mxu0 0.0
    %710 = vmatprep.subr.mxu0 0.0
    %711 = vmatpush1.msra.mxu0 0.0
    %712 = vmatprep.subr.mxu0 0.0
    %713 = vmatpush1.msra.mxu0 0.0
    %714 = vmatprep.subr.mxu0 0.0
    %715 = vmatpush1.msra.mxu0 0.0
    %716 = vmatprep.subr.mxu0 0.0
    %717 = vmatpush1.msra.mxu0 0.0
    %718 = vmatprep.subr.mxu0 0.0
    %719 = vmatpush1.msra.mxu0 0.0
    %720 = vmatprep.subr.mxu0 0.0
    %721 = vmatpush1.msra.mxu0 0.0
    %722 = vmatprep.subr.mxu0 0.0
    %723 = vmatpush1.msra.mxu0 0.0
    %724 = vmatprep.subr.mxu0 0.0
    %725 = vmatpush1.msra.mxu0 0.0
    %726 = vmatprep.subr.mxu0 0.0
    %727 = vmatpush1.msra.mxu0 0.0
    %728 = vmatprep.subr.mxu0 0.0
    %729 = vmatpush1.msra.mxu0 0.0
    %730 = vmatprep.subr.mxu0 0.0
    %731 = vmatpush1.msra.mxu0 0.0
    %732 = vmatprep.subr.mxu0 0.0
    %733 = vmatpush1.msra.mxu0 0.0
    %734 = vmatprep.subr.mxu0 0.0
    %735 = vmatpush1.msra.mxu0 0.0
    %736 = vmatprep.subr.mxu0 0.0
    %737 = vmatpush1.msra.mxu0 0.0
    %738 = vmatprep.subr.mxu0 0.0
    %739 = vmatpush1.msra.mxu0 0.0
    %740 = vmatprep.subr.mxu0 0.0
    %741 = vmatpush1.msra.mxu0 0.0
    %742 = vmatprep.subr.mxu0 0.0
    %743 = vmatpush1.msra.mxu0 0.0
    %744 = vmatprep.subr.mxu0 0.0
    %745 = vmatpush1.msra.mxu0 0.0
    %746 = vmatprep.subr.mxu0 0.0
    %747 = vmatpush1.msra.mxu0 0.0
    %748 = vmatprep.subr.mxu0 0.0
    %749 = vmatpush1.msra.mxu0 0.0
    %750 = vmatprep.subr.mxu0 0.0
    %751 = vmatpush1.msra.mxu0 0.0
    %752 = vmatprep.subr.mxu0 0.0
    %753 = vmatpush1.msra.mxu0 0.0
    %754 = vmatprep.subr.mxu0 0.0
    %755 = vmatpush1.msra.mxu0 0.0
    %756 = vmatprep.subr.mxu0 0.0
    %757 = vmatpush1.msra.mxu0 0.0
    %758 = vmatprep.subr.mxu0 0.0
    %759 = vmatpush1.msra.mxu0 0.0
    %760 = vmatprep.mubr.f32.mxu0 0.0
    %761 = vmatmul.mubr.f32.gmra.mrb[0].mxu0 %v691
    %v762 = vpop.f32.mrb[0].mxu0
    %v763 = vadd.f32 %v679, %v762
    %v764 = vpop.f32.mrb[0].mxu0
    %765 = vmatprep.mubr.f32.mxu0 0.0
    %766 = vmatmul.mubr.f32.gmra.mrb[0].mxu0 %v694
    %v767 = vpop.f32.mrb[0].mxu0
    %v768 = vadd.f32 %v683, %v767
    %v769 = vpop.f32.mrb[0].mxu0
    %770 = vdwg.mxu0
    %v771 = vld [vmem:[#allocation4 + $0xe8] sm:$0x1]
    %v772 = vlaneseq
    %v773 = vshrl.u32 %v772, 7
    %v774 = vsub.s32 0, %v773
    %v775 = vrot.slane %v771, %v774
    %v776 = vadd.f32 %v763, %v775
    %v777 = vadd.f32 %v768, %v775
    %vm778 = vcmp.ge.f32.partialorder %v776, 0.0
    %vm779 = vcmp.ge.f32.partialorder %v777, 0.0
    %v780 = vmul.f32 %v776, 0.01
    %v781 = vmul.f32 %v777, 0.01
    %v782 = vsel %vm778, %v776, %v780
    %v783 = vsel %vm779, %v777, %v781
    %v784 = vld [vmem:[#allocation4 + $0xf0] sm:$0xff]
    %v785 = vld [vmem:[#allocation4 + $0xf8] sm:$0xff]
    %v786 = vld [vmem:[#allocation4 + $0x100] sm:$0xff]
    %v787 = vld [vmem:[#allocation4 + $0x108] sm:$0xff]
    %v788 = vld [vmem:[#allocation4 + $0x110] sm:$0x1]
    %v789 = vlaneseq
    %v790 = vshrl.u32 %v789, 7
    %v791 = vsub.s32 0, %v790
    %v792 = vrot.slane %v788, %v791
    %v794 = vsel %vm237, %v782, 0
    %v797 = vsel %vm237, %v783, 0
    %799 = vmatprep.subr.mxu0 0.0
    %800 = vmatpush1.msra.mxu0 %v784
    %801 = vmatprep.subr.mxu0 0.0
    %802 = vmatpush1.msra.mxu0 %v785
    %803 = vmatprep.subr.mxu0 0.0
    %804 = vmatpush1.msra.mxu0 %v786
    %805 = vmatprep.subr.mxu0 0.0
    %806 = vmatpush1.msra.mxu0 %v787
    %807 = vmatprep.subr.mxu0 0.0
    %808 = vmatpush1.msra.mxu0 0.0
    %809 = vmatprep.subr.mxu0 0.0
    %810 = vmatpush1.msra.mxu0 0.0
    %811 = vmatprep.subr.mxu0 0.0
    %812 = vmatpush1.msra.mxu0 0.0
    %813 = vmatprep.subr.mxu0 0.0
    %814 = vmatpush1.msra.mxu0 0.0
    %815 = vmatprep.subr.mxu0 0.0
    %816 = vmatpush1.msra.mxu0 0.0
    %817 = vmatprep.subr.mxu0 0.0
    %818 = vmatpush1.msra.mxu0 0.0
    %819 = vmatprep.subr.mxu0 0.0
    %820 = vmatpush1.msra.mxu0 0.0
    %821 = vmatprep.subr.mxu0 0.0
    %822 = vmatpush1.msra.mxu0 0.0
    %823 = vmatprep.subr.mxu0 0.0
    %824 = vmatpush1.msra.mxu0 0.0
    %825 = vmatprep.subr.mxu0 0.0
    %826 = vmatpush1.msra.mxu0 0.0
    %827 = vmatprep.subr.mxu0 0.0
    %828 = vmatpush1.msra.mxu0 0.0
    %829 = vmatprep.subr.mxu0 0.0
    %830 = vmatpush1.msra.mxu0 0.0
    %831 = vmatprep.subr.mxu0 0.0
    %832 = vmatpush1.msra.mxu0 0.0
    %833 = vmatprep.subr.mxu0 0.0
    %834 = vmatpush1.msra.mxu0 0.0
    %835 = vmatprep.subr.mxu0 0.0
    %836 = vmatpush1.msra.mxu0 0.0
    %837 = vmatprep.subr.mxu0 0.0
    %838 = vmatpush1.msra.mxu0 0.0
    %839 = vmatprep.subr.mxu0 0.0
    %840 = vmatpush1.msra.mxu0 0.0
    %841 = vmatprep.subr.mxu0 0.0
    %842 = vmatpush1.msra.mxu0 0.0
    %843 = vmatprep.subr.mxu0 0.0
    %844 = vmatpush1.msra.mxu0 0.0
    %845 = vmatprep.subr.mxu0 0.0
    %846 = vmatpush1.msra.mxu0 0.0
    %847 = vmatprep.subr.mxu0 0.0
    %848 = vmatpush1.msra.mxu0 0.0
    %849 = vmatprep.subr.mxu0 0.0
    %850 = vmatpush1.msra.mxu0 0.0
    %851 = vmatprep.subr.mxu0 0.0
    %852 = vmatpush1.msra.mxu0 0.0
    %853 = vmatprep.subr.mxu0 0.0
    %854 = vmatpush1.msra.mxu0 0.0
    %855 = vmatprep.subr.mxu0 0.0
    %856 = vmatpush1.msra.mxu0 0.0
    %857 = vmatprep.subr.mxu0 0.0
    %858 = vmatpush1.msra.mxu0 0.0
    %859 = vmatprep.subr.mxu0 0.0
    %860 = vmatpush1.msra.mxu0 0.0
    %861 = vmatprep.subr.mxu0 0.0
    %862 = vmatpush1.msra.mxu0 0.0
    %863 = vmatprep.mubr.f32.mxu0 0.0
    %864 = vmatmul.mubr.f32.gmra.mrb[0].mxu0 %v794
    %v865 = vpop.f32.mrb[0].mxu0
    %v866 = vadd.f32 %v792, %v865
    %v867 = vpop.f32.mrb[0].mxu0
    %868 = vmatprep.mubr.f32.mxu0 0.0
    %869 = vmatmul.mubr.f32.gmra.mrb[0].mxu0 %v797
    %v870 = vpop.f32.mrb[0].mxu0
    %v871 = vadd.f32 %v792, %v870
    %v872 = vpop.f32.mrb[0].mxu0
    %873 = vdwg.mxu0
    %v874 = vadd.f32 %v866, %v141
    %v875 = vadd.f32 %v871, %v142
    %vm876 = vcmp.ge.f32.partialorder %v874, 0.0
    %vm877 = vcmp.ge.f32.partialorder %v875, 0.0
    %v878 = vmul.f32 %v874, 0.01
    %v879 = vmul.f32 %v875, 0.01
    %v880 = vsel %vm876, %v874, %v878
    %v881 = vsel %vm877, %v875, %v879
    %v882 = vadd.f32 %v577, %v313
    %v883 = vadd.f32 %v880, %v141
    %v884 = vadd.f32 %v881, %v142
    %v885 = vsel %vm237, %v883, 0.0
    %v886 = vrot.slane %v885, 4
    %v887 = vadd.f32 %v885, %v886
    %v888 = vrot.slane %v887, 2
    %v889 = vadd.f32 %v887, %v888
    %v890 = vrot.slane %v889, 1
    %v891 = vadd.f32 %v889, %v890
    %v892 = vsel %vm237, %v884, 0.0
    %v893 = vrot.slane %v892, 4
    %v894 = vadd.f32 %v892, %v893
    %v895 = vrot.slane %v894, 2
    %v896 = vadd.f32 %v894, %v895
    %v897 = vrot.slane %v896, 1
    %v898 = vadd.f32 %v896, %v897
    %v899 = vld [vmem:[#allocation4 + $0x118] sm:$0xff]
    %v900 = vld [vmem:[#allocation4 + $0x120] sm:$0xff]
    %v901 = vld [vmem:[#allocation4 + $0x128] sm:$0xff]
    %v902 = vld [vmem:[#allocation4 + $0x130] sm:$0xff]
    %v903 = vld [vmem:[#allocation4 + $0x138] sm:$0xff]
    %v904 = vld [vmem:[#allocation4 + $0x140] sm:$0xff]
    %v907 = vsel %vm336, %v898, %v891
    %v908 = vsel %vm237, %v907, 0
    %910 = vmatprep.subr.mxu0 0.0
    %911 = vmatpush1.msra.mxu0 %v901
    %912 = vmatprep.subr.mxu0 0.0
    %913 = vmatpush1.msra.mxu0 %v902
    %914 = vmatprep.subr.mxu0 0.0
    %915 = vmatpush1.msra.mxu0 %v903
    %916 = vmatprep.subr.mxu0 0.0
    %917 = vmatpush1.msra.mxu0 %v904
    %918 = vmatprep.subr.mxu0 0.0
    %919 = vmatpush1.msra.mxu0 0.0
    %920 = vmatprep.subr.mxu0 0.0
    %921 = vmatpush1.msra.mxu0 0.0
    %922 = vmatprep.subr.mxu0 0.0
    %923 = vmatpush1.msra.mxu0 0.0
    %924 = vmatprep.subr.mxu0 0.0
    %925 = vmatpush1.msra.mxu0 0.0
    %926 = vmatprep.subr.mxu0 0.0
    %927 = vmatpush1.msra.mxu0 0.0
    %928 = vmatprep.subr.mxu0 0.0
    %929 = vmatpush1.msra.mxu0 0.0
    %930 = vmatprep.subr.mxu0 0.0
    %931 = vmatpush1.msra.mxu0 0.0
    %932 = vmatprep.subr.mxu0 0.0
    %933 = vmatpush1.msra.mxu0 0.0
    %934 = vmatprep.subr.mxu0 0.0
    %935 = vmatpush1.msra.mxu0 0.0
    %936 = vmatprep.subr.mxu0 0.0
    %937 = vmatpush1.msra.mxu0 0.0
    %938 = vmatprep.subr.mxu0 0.0
    %939 = vmatpush1.msra.mxu0 0.0
    %940 = vmatprep.subr.mxu0 0.0
    %941 = vmatpush1.msra.mxu0 0.0
    %942 = vmatprep.subr.mxu0 0.0
    %943 = vmatpush1.msra.mxu0 0.0
    %944 = vmatprep.subr.mxu0 0.0
    %945 = vmatpush1.msra.mxu0 0.0
    %946 = vmatprep.subr.mxu0 0.0
    %947 = vmatpush1.msra.mxu0 0.0
    %948 = vmatprep.subr.mxu0 0.0
    %949 = vmatpush1.msra.mxu0 0.0
    %950 = vmatprep.subr.mxu0 0.0
    %951 = vmatpush1.msra.mxu0 0.0
    %952 = vmatprep.subr.mxu0 0.0
    %953 = vmatpush1.msra.mxu0 0.0
    %954 = vmatprep.subr.mxu0 0.0
    %955 = vmatpush1.msra.mxu0 0.0
    %956 = vmatprep.subr.mxu0 0.0
    %957 = vmatpush1.msra.mxu0 0.0
    %958 = vmatprep.subr.mxu0 0.0
    %959 = vmatpush1.msra.mxu0 0.0
    %960 = vmatprep.subr.mxu0 0.0
    %961 = vmatpush1.msra.mxu0 0.0
    %962 = vmatprep.subr.mxu0 0.0
    %963 = vmatpush1.msra.mxu0 0.0
    %964 = vmatprep.subr.mxu0 0.0
    %965 = vmatpush1.msra.mxu0 0.0
    %966 = vmatprep.subr.mxu0 0.0
    %967 = vmatpush1.msra.mxu0 0.0
    %968 = vmatprep.subr.mxu0 0.0
    %969 = vmatpush1.msra.mxu0 0.0
    %970 = vmatprep.subr.mxu0 0.0
    %971 = vmatpush1.msra.mxu0 0.0
    %972 = vmatprep.subr.mxu0 0.0
    %973 = vmatpush1.msra.mxu0 0.0
    %974 = vmatprep.mubr.f32.mxu0 0.0
    %975 = vmatmul.mubr.f32.gmra.mrb[0].mxu0 %v908
    %v976 = vpop.f32.mrb[0].mxu0
    %v977 = vadd.f32 0.0, %v976
    %v978 = vpop.f32.mrb[0].mxu0
    %979 = vdwg.mxu0
    %v981 = vsel %vm151, %v882, 0
    %983 = vmatprep.subr.mxu0 0.0
    %984 = vmatpush1.msra.mxu0 %v899
    %985 = vmatprep.subr.mxu0 0.0
    %986 = vmatpush1.msra.mxu0 %v900
    %987 = vmatprep.subr.mxu0 0.0
    %988 = vmatpush1.msra.mxu0 0.0
    %989 = vmatprep.subr.mxu0 0.0
    %990 = vmatpush1.msra.mxu0 0.0
    %991 = vmatprep.subr.mxu0 0.0
    %992 = vmatpush1.msra.mxu0 0.0
    %993 = vmatprep.subr.mxu0 0.0
    %994 = vmatpush1.msra.mxu0 0.0
    %995 = vmatprep.subr.mxu0 0.0
    %996 = vmatpush1.msra.mxu0 0.0
    %997 = vmatprep.subr.mxu0 0.0
    %998 = vmatpush1.msra.mxu0 0.0
    %999 = vmatprep.subr.mxu0 0.0
    %1000 = vmatpush1.msra.mxu0 0.0
    %1001 = vmatprep.subr.mxu0 0.0
    %1002 = vmatpush1.msra.mxu0 0.0
    %1003 = vmatprep.subr.mxu0 0.0
    %1004 = vmatpush1.msra.mxu0 0.0
    %1005 = vmatprep.subr.mxu0 0.0
    %1006 = vmatpush1.msra.mxu0 0.0
    %1007 = vmatprep.subr.mxu0 0.0
    %1008 = vmatpush1.msra.mxu0 0.0
    %1009 = vmatprep.subr.mxu0 0.0
    %1010 = vmatpush1.msra.mxu0 0.0
    %1011 = vmatprep.subr.mxu0 0.0
    %1012 = vmatpush1.msra.mxu0 0.0
    %1013 = vmatprep.subr.mxu0 0.0
    %1014 = vmatpush1.msra.mxu0 0.0
    %1015 = vmatprep.subr.mxu0 0.0
    %1016 = vmatpush1.msra.mxu0 0.0
    %1017 = vmatprep.subr.mxu0 0.0
    %1018 = vmatpush1.msra.mxu0 0.0
    %1019 = vmatprep.subr.mxu0 0.0
    %1020 = vmatpush1.msra.mxu0 0.0
    %1021 = vmatprep.subr.mxu0 0.0
    %1022 = vmatpush1.msra.mxu0 0.0
    %1023 = vmatprep.subr.mxu0 0.0
    %1024 = vmatpush1.msra.mxu0 0.0
    %1025 = vmatprep.subr.mxu0 0.0
    %1026 = vmatpush1.msra.mxu0 0.0
    %1027 = vmatprep.subr.mxu0 0.0
    %1028 = vmatpush1.msra.mxu0 0.0
    %1029 = vmatprep.subr.mxu0 0.0
    %1030 = vmatpush1.msra.mxu0 0.0
    %1031 = vmatprep.subr.mxu0 0.0
    %1032 = vmatpush1.msra.mxu0 0.0
    %1033 = vmatprep.subr.mxu0 0.0
    %1034 = vmatpush1.msra.mxu0 0.0
    %1035 = vmatprep.subr.mxu0 0.0
    %1036 = vmatpush1.msra.mxu0 0.0
    %1037 = vmatprep.subr.mxu0 0.0
    %1038 = vmatpush1.msra.mxu0 0.0
    %1039 = vmatprep.subr.mxu0 0.0
    %1040 = vmatpush1.msra.mxu0 0.0
    %1041 = vmatprep.subr.mxu0 0.0
    %1042 = vmatpush1.msra.mxu0 0.0
    %1043 = vmatprep.subr.mxu0 0.0
    %1044 = vmatpush1.msra.mxu0 0.0
    %1045 = vmatprep.subr.mxu0 0.0
    %1046 = vmatpush1.msra.mxu0 0.0
    %1047 = vmatprep.mubr.f32.mxu0 0.0
    %1048 = vmatmul.mubr.f32.gmra.mrb[0].mxu0 %v981
    %v1049 = vpop.f32.mrb[0].mxu0
    %v1050 = vadd.f32 %v977, %v1049
    %v1051 = vpop.f32.mrb[0].mxu0
    %1052 = vdwg.mxu0
    %v1053 = vld [vmem:[#allocation4 + $0x148] sm:$0x1]
    %v1054 = vlaneseq
    %v1055 = vshrl.u32 %v1054, 7
    %v1056 = vsub.s32 0, %v1055
    %v1057 = vrot.slane %v1053, %v1056
    %v1058 = vadd.f32 %v1050, %v1057
    %vm1059 = vcmp.ge.f32.partialorder %v1058, 0.0
    %v1060 = vmul.f32 %v1058, 0.01
    %v1061 = vsel %vm1059, %v1058, %v1060
    %v1062 = vld [vmem:[#allocation4 + $0x150] sm:$0xff]
    %v1063 = vld [vmem:[#allocation4 + $0x158] sm:$0xff]
    %v1064 = vld [vmem:[#allocation4 + $0x160] sm:$0xff]
    %v1065 = vld [vmem:[#allocation4 + $0x168] sm:$0xff]
    %v1066 = vld [vmem:[#allocation4 + $0x170] sm:$0x1]
    %v1067 = vlaneseq
    %v1068 = vshrl.u32 %v1067, 7
    %v1069 = vsub.s32 0, %v1068
    %v1070 = vrot.slane %v1066, %v1069
    %v1072 = vsel %vm237, %v1061, 0
    %1074 = vmatprep.subr.mxu0 0.0
    %1075 = vmatpush1.msra.mxu0 %v1062
    %1076 = vmatprep.subr.mxu0 0.0
    %1077 = vmatpush1.msra.mxu0 %v1063
    %1078 = vmatprep.subr.mxu0 0.0
    %1079 = vmatpush1.msra.mxu0 %v1064
    %1080 = vmatprep.subr.mxu0 0.0
    %1081 = vmatpush1.msra.mxu0 %v1065
    %1082 = vmatprep.subr.mxu0 0.0
    %1083 = vmatpush1.msra.mxu0 0.0
    %1084 = vmatprep.subr.mxu0 0.0
    %1085 = vmatpush1.msra.mxu0 0.0
    %1086 = vmatprep.subr.mxu0 0.0
    %1087 = vmatpush1.msra.mxu0 0.0
    %1088 = vmatprep.subr.mxu0 0.0
    %1089 = vmatpush1.msra.mxu0 0.0
    %1090 = vmatprep.subr.mxu0 0.0
    %1091 = vmatpush1.msra.mxu0 0.0
    %1092 = vmatprep.subr.mxu0 0.0
    %1093 = vmatpush1.msra.mxu0 0.0
    %1094 = vmatprep.subr.mxu0 0.0
    %1095 = vmatpush1.msra.mxu0 0.0
    %1096 = vmatprep.subr.mxu0 0.0
    %1097 = vmatpush1.msra.mxu0 0.0
    %1098 = vmatprep.subr.mxu0 0.0
    %1099 = vmatpush1.msra.mxu0 0.0
    %1100 = vmatprep.subr.mxu0 0.0
    %1101 = vmatpush1.msra.mxu0 0.0
    %1102 = vmatprep.subr.mxu0 0.0
    %1103 = vmatpush1.msra.mxu0 0.0
    %1104 = vmatprep.subr.mxu0 0.0
    %1105 = vmatpush1.msra.mxu0 0.0
    %1106 = vmatprep.subr.mxu0 0.0
    %1107 = vmatpush1.msra.mxu0 0.0
    %1108 = vmatprep.subr.mxu0 0.0
    %1109 = vmatpush1.msra.mxu0 0.0
    %1110 = vmatprep.subr.mxu0 0.0
    %1111 = vmatpush1.msra.mxu0 0.0
    %1112 = vmatprep.subr.mxu0 0.0
    %1113 = vmatpush1.msra.mxu0 0.0
    %1114 = vmatprep.subr.mxu0 0.0
    %1115 = vmatpush1.msra.mxu0 0.0
    %1116 = vmatprep.subr.mxu0 0.0
    %1117 = vmatpush1.msra.mxu0 0.0
    %1118 = vmatprep.subr.mxu0 0.0
    %1119 = vmatpush1.msra.mxu0 0.0
    %1120 = vmatprep.subr.mxu0 0.0
    %1121 = vmatpush1.msra.mxu0 0.0
    %1122 = vmatprep.subr.mxu0 0.0
    %1123 = vmatpush1.msra.mxu0 0.0
    %1124 = vmatprep.subr.mxu0 0.0
    %1125 = vmatpush1.msra.mxu0 0.0
    %1126 = vmatprep.subr.mxu0 0.0
    %1127 = vmatpush1.msra.mxu0 0.0
    %1128 = vmatprep.subr.mxu0 0.0
    %1129 = vmatpush1.msra.mxu0 0.0
    %1130 = vmatprep.subr.mxu0 0.0
    %1131 = vmatpush1.msra.mxu0 0.0
    %1132 = vmatprep.subr.mxu0 0.0
    %1133 = vmatpush1.msra.mxu0 0.0
    %1134 = vmatprep.subr.mxu0 0.0
    %1135 = vmatpush1.msra.mxu0 0.0
    %1136 = vmatprep.subr.mxu0 0.0
    %1137 = vmatpush1.msra.mxu0 0.0
    %1138 = vmatprep.mubr.f32.mxu0 0.0
    %1139 = vmatmul.mubr.f32.gmra.mrb[0].mxu0 %v1072
    %v1140 = vpop.f32.mrb[0].mxu0
    %v1141 = vadd.f32 %v1070, %v1140
    %v1142 = vpop.f32.mrb[0].mxu0
    %1143 = vdwg.mxu0
    %v1144 = vadd.f32 %v1141, %v882
    %vm1145 = vcmp.ge.f32.partialorder %v1144, 0.0
    %v1146 = vmul.f32 %v1144, 0.01
    %v1147 = vsel %vm1145, %v1144, %v1146
    %v1148 = vld [vmem:[#allocation4 + $0x198] sm:$0xff]
    %v1149 = vld [vmem:[#allocation4 + $0x1a0] sm:$0xff]
    %v1151 = vsel %vm151, %v1147, 0
    %1153 = vmatprep.subr.mxu0 0.0
    %1154 = vmatpush1.msra.mxu0 %v1148
    %1155 = vmatprep.subr.mxu0 0.0
    %1156 = vmatpush1.msra.mxu0 %v1149
    %1157 = vmatprep.subr.mxu0 0.0
    %1158 = vmatpush1.msra.mxu0 0.0
    %1159 = vmatprep.subr.mxu0 0.0
    %1160 = vmatpush1.msra.mxu0 0.0
    %1161 = vmatprep.subr.mxu0 0.0
    %1162 = vmatpush1.msra.mxu0 0.0
    %1163 = vmatprep.subr.mxu0 0.0
    %1164 = vmatpush1.msra.mxu0 0.0
    %1165 = vmatprep.subr.mxu0 0.0
    %1166 = vmatpush1.msra.mxu0 0.0
    %1167 = vmatprep.subr.mxu0 0.0
    %1168 = vmatpush1.msra.mxu0 0.0
    %1169 = vmatprep.subr.mxu0 0.0
    %1170 = vmatpush1.msra.mxu0 0.0
    %1171 = vmatprep.subr.mxu0 0.0
    %1172 = vmatpush1.msra.mxu0 0.0
    %1173 = vmatprep.subr.mxu0 0.0
    %1174 = vmatpush1.msra.mxu0 0.0
    %1175 = vmatprep.subr.mxu0 0.0
    %1176 = vmatpush1.msra.mxu0 0.0
    %1177 = vmatprep.subr.mxu0 0.0
    %1178 = vmatpush1.msra.mxu0 0.0
    %1179 = vmatprep.subr.mxu0 0.0
    %1180 = vmatpush1.msra.mxu0 0.0
    %1181 = vmatprep.subr.mxu0 0.0
    %1182 = vmatpush1.msra.mxu0 0.0
    %1183 = vmatprep.subr.mxu0 0.0
    %1184 = vmatpush1.msra.mxu0 0.0
    %1185 = vmatprep.subr.mxu0 0.0
    %1186 = vmatpush1.msra.mxu0 0.0
    %1187 = vmatprep.subr.mxu0 0.0
    %1188 = vmatpush1.msra.mxu0 0.0
    %1189 = vmatprep.subr.mxu0 0.0
    %1190 = vmatpush1.msra.mxu0 0.0
    %1191 = vmatprep.subr.mxu0 0.0
    %1192 = vmatpush1.msra.mxu0 0.0
    %1193 = vmatprep.subr.mxu0 0.0
    %1194 = vmatpush1.msra.mxu0 0.0
    %1195 = vmatprep.subr.mxu0 0.0
    %1196 = vmatpush1.msra.mxu0 0.0
    %1197 = vmatprep.subr.mxu0 0.0
    %1198 = vmatpush1.msra.mxu0 0.0
    %1199 = vmatprep.subr.mxu0 0.0
    %1200 = vmatpush1.msra.mxu0 0.0
    %1201 = vmatprep.subr.mxu0 0.0
    %1202 = vmatpush1.msra.mxu0 0.0
    %1203 = vmatprep.subr.mxu0 0.0
    %1204 = vmatpush1.msra.mxu0 0.0
    %1205 = vmatprep.subr.mxu0 0.0
    %1206 = vmatpush1.msra.mxu0 0.0
    %1207 = vmatprep.subr.mxu0 0.0
    %1208 = vmatpush1.msra.mxu0 0.0
    %1209 = vmatprep.subr.mxu0 0.0
    %1210 = vmatpush1.msra.mxu0 0.0
    %1211 = vmatprep.subr.mxu0 0.0
    %1212 = vmatpush1.msra.mxu0 0.0
    %1213 = vmatprep.subr.mxu0 0.0
    %1214 = vmatpush1.msra.mxu0 0.0
    %1215 = vmatprep.subr.mxu0 0.0
    %1216 = vmatpush1.msra.mxu0 0.0
    %1217 = vmatprep.mubr.f32.mxu0 0.0
    %1218 = vmatmul.mubr.f32.gmra.mrb[0].mxu0 %v1151
    %v1219 = vpop.f32.mrb[0].mxu0
    %v1220 = vadd.f32 0.0, %v1219
    %v1221 = vpop.f32.mrb[0].mxu0
    %1222 = vdwg.mxu0
    %v1225 = vunpack.c.l.s4 1966171168
    %v1226 = vunpack.c.0.s8 %v1225
    %v1227 = vlaneseq
    %v1228 = vshrl.u32 %v1227, 7
    %v1229 = vsub.s32 %v1226, %v1228
    %v1230 = vrot.slane %v1220, %v1229
    %v1231 = vcombine.high %v1230, %v1230
    %v1233 = vunpack.c.l.s4 1966171168
    %v1234 = vunpack.c.0.s8 %v1233
    %v1235 = vlaneseq
    %v1236 = vshrl.u32 %v1235, 7
    %v1237 = vsub.s32 %v1234, %v1236
    %v1238 = vrot.slane %v1230, %v1237
    %v1240 = vunpack.c.l.s4 1966171168
    %v1241 = vunpack.c.0.s8 %v1240
    %v1242 = vlaneseq
    %v1243 = vshrl.u32 %v1242, 7
    %v1244 = vsub.s32 %v1241, %v1243
    %v1245 = vrot.slane %v1231, %v1244
    %v1246 = vlaneseq
    %v1247 = vshrl.u32 %v1246, 7
    %v1248 = vsub.s32 0, %v1247
    %v1249 = vrot.slane %v1238, %v1248
    %v1250 = vlaneseq
    %v1251 = vshrl.u32 %v1250, 7
    %v1252 = vsub.s32 0, %v1251
    %v1253 = vrot.slane %v1245, %v1252
    %v1256 = vld [vmem:[#allocation4 + $0x178] sm:$0xff]
    %v1257 = vld [vmem:[#allocation4 + $0x180] sm:$0xff]
    %v1258 = vld [vmem:[#allocation4 + $0x188] sm:$0xff]
    %v1259 = vld [vmem:[#allocation4 + $0x190] sm:$0xff]
    %v1261 = vsel %vm237, %v883, 0
    %v1264 = vsel %vm237, %v884, 0
    %1266 = vmatprep.subr.mxu0 0.0
    %1267 = vmatpush1.msra.mxu0 %v1256
    %1268 = vmatprep.subr.mxu0 0.0
    %1269 = vmatpush1.msra.mxu0 %v1257
    %1270 = vmatprep.subr.mxu0 0.0
    %1271 = vmatpush1.msra.mxu0 %v1258
    %1272 = vmatprep.subr.mxu0 0.0
    %1273 = vmatpush1.msra.mxu0 %v1259
    %1274 = vmatprep.subr.mxu0 0.0
    %1275 = vmatpush1.msra.mxu0 0.0
    %1276 = vmatprep.subr.mxu0 0.0
    %1277 = vmatpush1.msra.mxu0 0.0
    %1278 = vmatprep.subr.mxu0 0.0
    %1279 = vmatpush1.msra.mxu0 0.0
    %1280 = vmatprep.subr.mxu0 0.0
    %1281 = vmatpush1.msra.mxu0 0.0
    %1282 = vmatprep.subr.mxu0 0.0
    %1283 = vmatpush1.msra.mxu0 0.0
    %1284 = vmatprep.subr.mxu0 0.0
    %1285 = vmatpush1.msra.mxu0 0.0
    %1286 = vmatprep.subr.mxu0 0.0
    %1287 = vmatpush1.msra.mxu0 0.0
    %1288 = vmatprep.subr.mxu0 0.0
    %1289 = vmatpush1.msra.mxu0 0.0
    %1290 = vmatprep.subr.mxu0 0.0
    %1291 = vmatpush1.msra.mxu0 0.0
    %1292 = vmatprep.subr.mxu0 0.0
    %1293 = vmatpush1.msra.mxu0 0.0
    %1294 = vmatprep.subr.mxu0 0.0
    %1295 = vmatpush1.msra.mxu0 0.0
    %1296 = vmatprep.subr.mxu0 0.0
    %1297 = vmatpush1.msra.mxu0 0.0
    %1298 = vmatprep.subr.mxu0 0.0
    %1299 = vmatpush1.msra.mxu0 0.0
    %1300 = vmatprep.subr.mxu0 0.0
    %1301 = vmatpush1.msra.mxu0 0.0
    %1302 = vmatprep.subr.mxu0 0.0
    %1303 = vmatpush1.msra.mxu0 0.0
    %1304 = vmatprep.subr.mxu0 0.0
    %1305 = vmatpush1.msra.mxu0 0.0
    %1306 = vmatprep.subr.mxu0 0.0
    %1307 = vmatpush1.msra.mxu0 0.0
    %1308 = vmatprep.subr.mxu0 0.0
    %1309 = vmatpush1.msra.mxu0 0.0
    %1310 = vmatprep.subr.mxu0 0.0
    %1311 = vmatpush1.msra.mxu0 0.0
    %1312 = vmatprep.subr.mxu0 0.0
    %1313 = vmatpush1.msra.mxu0 0.0
    %1314 = vmatprep.subr.mxu0 0.0
    %1315 = vmatpush1.msra.mxu0 0.0
    %1316 = vmatprep.subr.mxu0 0.0
    %1317 = vmatpush1.msra.mxu0 0.0
    %1318 = vmatprep.subr.mxu0 0.0
    %1319 = vmatpush1.msra.mxu0 0.0
    %1320 = vmatprep.subr.mxu0 0.0
    %1321 = vmatpush1.msra.mxu0 0.0
    %1322 = vmatprep.subr.mxu0 0.0
    %1323 = vmatpush1.msra.mxu0 0.0
    %1324 = vmatprep.subr.mxu0 0.0
    %1325 = vmatpush1.msra.mxu0 0.0
    %1326 = vmatprep.subr.mxu0 0.0
    %1327 = vmatpush1.msra.mxu0 0.0
    %1328 = vmatprep.subr.mxu0 0.0
    %1329 = vmatpush1.msra.mxu0 0.0
    %1330 = vmatprep.mubr.f32.mxu0 0.0
    %1331 = vmatmul.mubr.f32.gmra.mrb[0].mxu0 %v1261
    %v1332 = vpop.f32.mrb[0].mxu0
    %v1333 = vadd.f32 %v1249, %v1332
    %v1334 = vpop.f32.mrb[0].mxu0
    %1335 = vmatprep.mubr.f32.mxu0 0.0
    %1336 = vmatmul.mubr.f32.gmra.mrb[0].mxu0 %v1264
    %v1337 = vpop.f32.mrb[0].mxu0
    %v1338 = vadd.f32 %v1253, %v1337
    %v1339 = vpop.f32.mrb[0].mxu0
    %1340 = vdwg.mxu0
    %v1341 = vld [vmem:[#allocation4 + $0x1a8] sm:$0x1]
    %v1342 = vlaneseq
    %v1343 = vshrl.u32 %v1342, 7
    %v1344 = vsub.s32 0, %v1343
    %v1345 = vrot.slane %v1341, %v1344
    %v1346 = vadd.f32 %v1333, %v1345
    %v1347 = vadd.f32 %v1338, %v1345
    %vm1348 = vcmp.ge.f32.partialorder %v1346, 0.0
    %vm1349 = vcmp.ge.f32.partialorder %v1347, 0.0
    %v1350 = vmul.f32 %v1346, 0.01
    %v1351 = vmul.f32 %v1347, 0.01
    %v1352 = vsel %vm1348, %v1346, %v1350
    %v1353 = vsel %vm1349, %v1347, %v1351
    %v1354 = vld [vmem:[#allocation4 + $0x1b0] sm:$0xff]
    %v1355 = vld [vmem:[#allocation4 + $0x1b8] sm:$0xff]
    %v1356 = vld [vmem:[#allocation4 + $0x1c0] sm:$0xff]
    %v1357 = vld [vmem:[#allocation4 + $0x1c8] sm:$0xff]
    %v1358 = vld [vmem:[#allocation4 + $0x1d0] sm:$0x1]
    %v1359 = vlaneseq
    %v1360 = vshrl.u32 %v1359, 7
    %v1361 = vsub.s32 0, %v1360
    %v1362 = vrot.slane %v1358, %v1361
    %v1364 = vsel %vm237, %v1352, 0
    %v1367 = vsel %vm237, %v1353, 0
    %1369 = vmatprep.subr.mxu0 0.0
    %1370 = vmatpush1.msra.mxu0 %v1354
    %1371 = vmatprep.subr.mxu0 0.0
    %1372 = vmatpush1.msra.mxu0 %v1355
    %1373 = vmatprep.subr.mxu0 0.0
    %1374 = vmatpush1.msra.mxu0 %v1356
    %1375 = vmatprep.subr.mxu0 0.0
    %1376 = vmatpush1.msra.mxu0 %v1357
    %1377 = vmatprep.subr.mxu0 0.0
    %1378 = vmatpush1.msra.mxu0 0.0
    %1379 = vmatprep.subr.mxu0 0.0
    %1380 = vmatpush1.msra.mxu0 0.0
    %1381 = vmatprep.subr.mxu0 0.0
    %1382 = vmatpush1.msra.mxu0 0.0
    %1383 = vmatprep.subr.mxu0 0.0
    %1384 = vmatpush1.msra.mxu0 0.0
    %1385 = vmatprep.subr.mxu0 0.0
    %1386 = vmatpush1.msra.mxu0 0.0
    %1387 = vmatprep.subr.mxu0 0.0
    %1388 = vmatpush1.msra.mxu0 0.0
    %1389 = vmatprep.subr.mxu0 0.0
    %1390 = vmatpush1.msra.mxu0 0.0
    %1391 = vmatprep.subr.mxu0 0.0
    %1392 = vmatpush1.msra.mxu0 0.0
    %1393 = vmatprep.subr.mxu0 0.0
    %1394 = vmatpush1.msra.mxu0 0.0
    %1395 = vmatprep.subr.mxu0 0.0
    %1396 = vmatpush1.msra.mxu0 0.0
    %1397 = vmatprep.subr.mxu0 0.0
    %1398 = vmatpush1.msra.mxu0 0.0
    %1399 = vmatprep.subr.mxu0 0.0
    %1400 = vmatpush1.msra.mxu0 0.0
    %1401 = vmatprep.subr.mxu0 0.0
    %1402 = vmatpush1.msra.mxu0 0.0
    %1403 = vmatprep.subr.mxu0 0.0
    %1404 = vmatpush1.msra.mxu0 0.0
    %1405 = vmatprep.subr.mxu0 0.0
    %1406 = vmatpush1.msra.mxu0 0.0
    %1407 = vmatprep.subr.mxu0 0.0
    %1408 = vmatpush1.msra.mxu0 0.0
    %1409 = vmatprep.subr.mxu0 0.0
    %1410 = vmatpush1.msra.mxu0 0.0
    %1411 = vmatprep.subr.mxu0 0.0
    %1412 = vmatpush1.msra.mxu0 0.0
    %1413 = vmatprep.subr.mxu0 0.0
    %1414 = vmatpush1.msra.mxu0 0.0
    %1415 = vmatprep.subr.mxu0 0.0
    %1416 = vmatpush1.msra.mxu0 0.0
    %1417 = vmatprep.subr.mxu0 0.0
    %1418 = vmatpush1.msra.mxu0 0.0
    %1419 = vmatprep.subr.mxu0 0.0
    %1420 = vmatpush1.msra.mxu0 0.0
    %1421 = vmatprep.subr.mxu0 0.0
    %1422 = vmatpush1.msra.mxu0 0.0
    %1423 = vmatprep.subr.mxu0 0.0
    %1424 = vmatpush1.msra.mxu0 0.0
    %1425 = vmatprep.subr.mxu0 0.0
    %1426 = vmatpush1.msra.mxu0 0.0
    %1427 = vmatprep.subr.mxu0 0.0
    %1428 = vmatpush1.msra.mxu0 0.0
    %1429 = vmatprep.subr.mxu0 0.0
    %1430 = vmatpush1.msra.mxu0 0.0
    %1431 = vmatprep.subr.mxu0 0.0
    %1432 = vmatpush1.msra.mxu0 0.0
    %1433 = vmatprep.mubr.f32.mxu0 0.0
    %1434 = vmatmul.mubr.f32.gmra.mrb[0].mxu0 %v1364
    %v1435 = vpop.f32.mrb[0].mxu0
    %v1436 = vadd.f32 %v1362, %v1435
    %v1437 = vpop.f32.mrb[0].mxu0
    %1438 = vmatprep.mubr.f32.mxu0 0.0
    %1439 = vmatmul.mubr.f32.gmra.mrb[0].mxu0 %v1367
    %v1440 = vpop.f32.mrb[0].mxu0
    %v1441 = vadd.f32 %v1362, %v1440
    %v1442 = vpop.f32.mrb[0].mxu0
    %1443 = vdwg.mxu0
    %v1444 = vadd.f32 %v1436, %v883
    %v1445 = vadd.f32 %v1441, %v884
    %vm1446 = vcmp.ge.f32.partialorder %v1444, 0.0
    %vm1447 = vcmp.ge.f32.partialorder %v1445, 0.0
    %v1448 = vmul.f32 %v1444, 0.01
    %v1449 = vmul.f32 %v1445, 0.01
    %v1450 = vsel %vm1446, %v1444, %v1448
    %v1451 = vsel %vm1447, %v1445, %v1449
    %v1452 = vadd.f32 %v1147, %v313
    %v1453 = vadd.f32 %v1450, %v141
    %v1454 = vadd.f32 %v1451, %v142
    %v1455 = vld [vmem:[#allocation4 + $0x1d8] sm:$0xff]
    %v1456 = vld [vmem:[#allocation4 + $0x1e0] sm:$0xff]
    %v1457 = vld [vmem:[#allocation4 + $0x1e8] sm:$0xff]
    %v1458 = vld [vmem:[#allocation4 + $0x1f0] sm:$0xff]
    %v1459 = vld [vmem:[#allocation4 + $0x1f8] sm:$0x1]
    %v1460 = vlaneseq
    %v1461 = vshrl.u32 %v1460, 7
    %v1462 = vsub.s32 0, %v1461
    %v1463 = vrot.slane %v1459, %v1462
    %v1465 = vsel %vm237, %v1453, 0
    %v1468 = vsel %vm237, %v1454, 0
    %1470 = vmatprep.subr.mxu0 0.0
    %1471 = vmatpush1.msra.mxu0 %v1455
    %1472 = vmatprep.subr.mxu0 0.0
    %1473 = vmatpush1.msra.mxu0 %v1456
    %1474 = vmatprep.subr.mxu0 0.0
    %1475 = vmatpush1.msra.mxu0 %v1457
    %1476 = vmatprep.subr.mxu0 0.0
    %1477 = vmatpush1.msra.mxu0 %v1458
    %1478 = vmatprep.subr.mxu0 0.0
    %1479 = vmatpush1.msra.mxu0 0.0
    %1480 = vmatprep.subr.mxu0 0.0
    %1481 = vmatpush1.msra.mxu0 0.0
    %1482 = vmatprep.subr.mxu0 0.0
    %1483 = vmatpush1.msra.mxu0 0.0
    %1484 = vmatprep.subr.mxu0 0.0
    %1485 = vmatpush1.msra.mxu0 0.0
    %1486 = vmatprep.subr.mxu0 0.0
    %1487 = vmatpush1.msra.mxu0 0.0
    %1488 = vmatprep.subr.mxu0 0.0
    %1489 = vmatpush1.msra.mxu0 0.0
    %1490 = vmatprep.subr.mxu0 0.0
    %1491 = vmatpush1.msra.mxu0 0.0
    %1492 = vmatprep.subr.mxu0 0.0
    %1493 = vmatpush1.msra.mxu0 0.0
    %1494 = vmatprep.subr.mxu0 0.0
    %1495 = vmatpush1.msra.mxu0 0.0
    %1496 = vmatprep.subr.mxu0 0.0
    %1497 = vmatpush1.msra.mxu0 0.0
    %1498 = vmatprep.subr.mxu0 0.0
    %1499 = vmatpush1.msra.mxu0 0.0
    %1500 = vmatprep.subr.mxu0 0.0
    %1501 = vmatpush1.msra.mxu0 0.0
    %1502 = vmatprep.subr.mxu0 0.0
    %1503 = vmatpush1.msra.mxu0 0.0
    %1504 = vmatprep.subr.mxu0 0.0
    %1505 = vmatpush1.msra.mxu0 0.0
    %1506 = vmatprep.subr.mxu0 0.0
    %1507 = vmatpush1.msra.mxu0 0.0
    %1508 = vmatprep.subr.mxu0 0.0
    %1509 = vmatpush1.msra.mxu0 0.0
    %1510 = vmatprep.subr.mxu0 0.0
    %1511 = vmatpush1.msra.mxu0 0.0
    %1512 = vmatprep.subr.mxu0 0.0
    %1513 = vmatpush1.msra.mxu0 0.0
    %1514 = vmatprep.subr.mxu0 0.0
    %1515 = vmatpush1.msra.mxu0 0.0
    %1516 = vmatprep.subr.mxu0 0.0
    %1517 = vmatpush1.msra.mxu0 0.0
    %1518 = vmatprep.subr.mxu0 0.0
    %1519 = vmatpush1.msra.mxu0 0.0
    %1520 = vmatprep.subr.mxu0 0.0
    %1521 = vmatpush1.msra.mxu0 0.0
    %1522 = vmatprep.subr.mxu0 0.0
    %1523 = vmatpush1.msra.mxu0 0.0
    %1524 = vmatprep.subr.mxu0 0.0
    %1525 = vmatpush1.msra.mxu0 0.0
    %1526 = vmatprep.subr.mxu0 0.0
    %1527 = vmatpush1.msra.mxu0 0.0
    %1528 = vmatprep.subr.mxu0 0.0
    %1529 = vmatpush1.msra.mxu0 0.0
    %1530 = vmatprep.subr.mxu0 0.0
    %1531 = vmatpush1.msra.mxu0 0.0
    %1532 = vmatprep.subr.mxu0 0.0
    %1533 = vmatpush1.msra.mxu0 0.0
    %1534 = vmatprep.mubr.f32.mxu0 0.0
    %1535 = vmatmul.mubr.f32.gmra.mrb[0].mxu0 %v1465
    %v1536 = vpop.f32.mrb[0].mxu0
    %v1537 = vadd.f32 %v1463, %v1536
    %v1538 = vpop.f32.mrb[0].mxu0
    %1539 = vmatprep.mubr.f32.mxu0 0.0
    %1540 = vmatmul.mubr.f32.gmra.mrb[0].mxu0 %v1468
    %v1541 = vpop.f32.mrb[0].mxu0
    %v1542 = vadd.f32 %v1463, %v1541
    %v1543 = vpop.f32.mrb[0].mxu0
    %1544 = vdwg.mxu0
    %vm1545 = vcmp.ge.f32.partialorder %v1537, 0.0
    %vm1546 = vcmp.ge.f32.partialorder %v1542, 0.0
    %v1547 = vmul.f32 %v1537, 0.01
    %v1548 = vmul.f32 %v1542, 0.01
    %v1549 = vsel %vm1545, %v1537, %v1547
    %v1550 = vsel %vm1546, %v1542, %v1548
    %1551 = vst [vmem:[%s3] sm:$0xff] %v1549
    %1552 = vst [vmem:[%s3 + $0x8] sm:$0xff] %v1550
    %vm1553 = vcmask 123904
    %1554 = vst.msk [vmem:[%s3 + $0x10] sm:$0x3] %vm1553, %v1452
    // Predicated region
    $region22: #{_epic_forward.1} parent=1 // pred_check
      _
    $region23: #{_epic_forward.1} parent=1 // pred_check_branch
      %1556 = sbr.rel (0) target = $region25
    $region24: #{_epic_forward.1} parent=1 // pred_region
      _
    $region25: #{_epic_forward.1} parent=1 // pred_fallthru
      _
    // Predicated region
    $region26: #{_epic_forward.1} parent=1 // pred_check
      _
    $region27: #{_epic_forward.1} parent=1 // pred_check_branch
      %1558 = sbr.rel (0) target = $region29
    $region28: #{_epic_forward.1} parent=1 // pred_region
      _
    $region29: #{_epic_forward.1} parent=1 // pred_fallthru
      _
    %1559 = vsyncpa [#allocation3], 1
    %1560 = vsyncpa [#allocation5], 1

</llo_original>
